<compile_context>
chip_gen: v7x
topology: tpu7x:2x2x1
jax: 0.10.0
libtpu: 0.0.40
codegen_flags: <defaults>
</compile_context>

<pallas_src>
import jax
import jax.numpy as jnp
from jax import lax
from jax.experimental import pallas as pl
from jax.experimental.pallas import tpu as pltpu

NEG_SLOPE = 0.2        # LeakyReLU slope inside GraphLayer attention
BN_EPS = 1e-5
MASK_NEG = -1e30       # additive mask value for non-edges
LANE = 128             # TPU lane width -> lane-dense feature padding


def graph_attention_kernel(x_ref, w_ref, attx_ref, se_ref, maskb_ref,
                           out_ref, psum_ref, psumsq_ref):
    """One grid step == TB sliding-window slices (graph + embeddings shared)."""
    tb, n, f_in = x_ref.shape
    dp = w_ref.shape[1]

    # 1) linear transform: fold TB windows into one MXU matmul      [TB*N, Dp]
    #    (f_in is tiny, so f32 inputs cost nothing; keeps score path exact)
    xw = jnp.dot(x_ref[...].reshape(tb * n, f_in), w_ref[...],
                 preferred_element_type=jnp.float32)

    # 2) attention-score reductions as one packed MXU matmul:
    #    col0 -> target "i" score part, col1 -> source "j" score part.
    #    The embedding part (se) is loop-invariant, precomputed in glue.
    sc = jnp.dot(xw, attx_ref[...], preferred_element_type=jnp.float32)
    sc = sc.reshape(tb, n, 2) + se_ref[...][None, :, :]             # [TB, N, 2]

    # 3) edge logits alpha[b,i,j] = sc[b,i,0] + sc[b,j,1] via an MXU outer-sum
    #    ([si,1] . [1,sj] == si + sj) -- avoids a minor-dim transpose.
    lane2 = lax.broadcasted_iota(jnp.int32, sc.shape, 2)
    a_i = jnp.where(lane2 == 0, sc, 1.0)                            # [si, 1]
    a_j = jnp.where(lane2 == 1, sc, 1.0)                            # [1, sj]
    alpha = jnp.einsum('bic,bjc->bij', a_i, a_j,
                       preferred_element_type=jnp.float32)          # [TB, N, N]
    alpha = jnp.where(alpha > 0, alpha, NEG_SLOPE * alpha)          # LeakyReLU(0.2)

    # 4) masked softmax over sources j per target i (== PyG segment softmax).
    #    Non-edges get -1e30 and underflow to exactly 0 in exp; self loops
    #    guarantee every row has >=1 unmasked entry, so m is finite, denom > 0.
    masked = alpha + maskb_ref[...][None, :, :]
    m = jnp.max(masked, axis=-1, keepdims=True)
    e = jnp.exp(masked - m)
    denom = jnp.sum(e, axis=-1, keepdims=True)

    # 5) aggregate with unnormalized weights (bf16 MXU inputs, f32 accumulate),
    #    fold the softmax denominator in afterwards (O(N*Dp) scale with an
    #    otherwise-idle EUP approx reciprocal instead of an O(N*N) divide).
    xw3 = xw.reshape(tb, n, dp)
    agg = jnp.einsum('bij,bjd->bid',
                     e.astype(jnp.bfloat16), xw3.astype(jnp.bfloat16),
                     preferred_element_type=jnp.float32)            # [TB, N, Dp]
    out = agg * pl.reciprocal(denom, approx=True)
    out_ref[...] = out

    # 6) per-step BatchNorm partial statistics over this step's TB*N rows
    flat = out.reshape(tb * n, dp)
    psum_ref[...] = jnp.sum(flat, axis=0, keepdims=True)
    psumsq_ref[...] = jnp.sum(flat * flat, axis=0, keepdims=True)


def bn_relu_kernel(y_ref, scale_ref, shift_ref, out_ref):
    """BatchNorm apply (precomputed per-channel scale/shift) + ReLU, row tile."""
    d = out_ref.shape[-1]
    z = y_ref[...] * scale_ref[...] + shift_ref[...]
    out_ref[...] = jnp.maximum(z[:, :d], 0.0)        # write only the D valid cols


def gnn_layer(x, adj, emb, w_t, att_i, att_j, att_em_i, att_em_j,
              bias, gamma, beta, *, tb=4, tr=64,
              vmem_limit=32 * 1024 * 1024):
    """GDN GNNLayer forward.

    x     : [B, N, F_in]  B sliding-window slices, N nodes each
    adj   : [N, N]        adj[i, j] = 1 iff edge j -> i (self loops included),
                          shared by all windows (GDN replicates the graph).
    emb   : [N, D]        node embeddings (shared across windows)
    w_t   : [F_in, D]     lin.weight pre-transposed
    att_* : [D]           attention parameter vectors
    bias / gamma / beta : [D]
    returns [B * N, D] == relu(batchnorm(graph_attention(x)))
    """
    B, N, f_in = x.shape
    D = w_t.shape[1]
    Dp = ((D + LANE - 1) // LANE) * LANE       # lane-dense feature width (>=128)

    # windows per grid step: largest divisor of B not exceeding `tb`
    tb = max(1, min(tb, B))
    while B % tb:
        tb -= 1
    G = B // tb

    # ---- one-time parameter packing / lane padding (glue, outside the kernels)
    def pad_last(a):
        return jnp.pad(a, [(0, 0)] * (a.ndim - 1) + [(0, Dp - D)])

    w_p = pad_last(w_t).astype(jnp.float32)                       # [F_in, Dp]
    emb_p = pad_last(emb).astype(jnp.float32)                     # [N, Dp]
    gamma_p = pad_last(gamma.reshape(1, D)).astype(jnp.float32)   # [1, Dp]
    beta_p = pad_last(beta.reshape(1, D)).astype(jnp.float32)     # [1, Dp]
    att_x_pack = (jnp.zeros((Dp, 2), jnp.float32)
                  .at[:D, 0].set(att_i).at[:D, 1].set(att_j))
    att_em_pack = (jnp.zeros((Dp, 2), jnp.float32)
                   .at[:D, 0].set(att_em_i).at[:D, 1].set(att_em_j))
    # loop-invariant embedding part of the attention scores, hoisted out of
    # the kernel (shared by every window): [N, 2]
    se = emb_p @ att_em_pack
    mask_bias = jnp.where(adj > 0, 0.0, MASK_NEG).astype(jnp.float32)   # [N, N]
    # GraphLayer's additive bias cancels exactly against the batch-mean
    # subtraction of training-mode BatchNorm, so it is dropped here.
    # (Not valid in eval mode with running statistics.)
    del bias

    cparams = pltpu.CompilerParams(
        dimension_semantics=("parallel",),          # shards steps across TCs
        vmem_limit_bytes=vmem_limit)                # explicit: v7x VMEM is 64 MiB

    # ---- kernel 1: batched graph attention + per-step BN partial statistics
    agg, psum, psumsq = pl.pallas_call(
        graph_attention_kernel,
        out_shape=(jax.ShapeDtypeStruct((B, N, Dp), jnp.float32),
                   jax.ShapeDtypeStruct((G, 1, Dp), jnp.float32),
                   jax.ShapeDtypeStruct((G, 1, Dp), jnp.float32)),
        grid_spec=pl.GridSpec(
            grid=(G,),
            in_specs=[
                pl.BlockSpec((tb, N, f_in), lambda b: (b, 0, 0)),   # x (tb windows)
                pl.BlockSpec((f_in, Dp), lambda b: (0, 0)),         # w (shared)
                pl.BlockSpec((Dp, 2), lambda b: (0, 0)),            # att_x_pack
                pl.BlockSpec((N, 2), lambda b: (0, 0)),             # emb scores
                pl.BlockSpec((N, N), lambda b: (0, 0)),             # additive mask
            ],
            out_specs=[
                pl.BlockSpec((tb, N, Dp), lambda b: (b, 0, 0)),     # aggregated
                pl.BlockSpec((None, 1, Dp), lambda b: (b, 0, 0)),   # partial sum
                pl.BlockSpec((None, 1, Dp), lambda b: (b, 0, 0)),   # partial sumsq
            ],
        ),
        compiler_params=cparams,
    )(x, w_p, att_x_pack, se, mask_bias)

    # ---- tiny glue reduction of the G partial stats -> per-channel scale/shift
    rows = B * N
    mean = jnp.sum(psum.reshape(G, Dp), axis=0, keepdims=True) / rows
    ex2 = jnp.sum(psumsq.reshape(G, Dp), axis=0, keepdims=True) / rows
    var = jnp.maximum(ex2 - mean * mean, 0.0)       # one-pass var, clamped >= 0
    inv_std = lax.rsqrt(var + BN_EPS)
    scale = gamma_p * inv_std                       # [1, Dp]
    shift = beta_p - mean * scale                   # [1, Dp]

    # ---- kernel 2: row-tiled BN apply + ReLU over ALL B*N nodes
    y = agg.reshape(rows, Dp)                       # contiguous reshape, no copy
    tr = max(8, min(tr, rows))
    if rows % tr:
        tr = rows                                   # fallback: single block
    out = pl.pallas_call(
        bn_relu_kernel,
        out_shape=jax.ShapeDtypeStruct((rows, D), jnp.float32),
        grid_spec=pl.GridSpec(
            grid=(rows // tr,),
            in_specs=[pl.BlockSpec((tr, Dp), lambda i: (i, 0)),
                      pl.BlockSpec((1, Dp), lambda i: (0, 0)),
                      pl.BlockSpec((1, Dp), lambda i: (0, 0))],
            out_specs=pl.BlockSpec((tr, D), lambda i: (i, 0)),
        ),
        compiler_params=pltpu.CompilerParams(
            dimension_semantics=("parallel",),
            vmem_limit_bytes=vmem_limit),
    )(y, scale, shift)

    return out


if __name__ == "__main__":
    key = jax.random.PRNGKey(0)
    # B sliding-window slices, N sensors/nodes, window length F_in, out_channel D
    B, N, F_IN, D = 8, 16, 8, 32
    ks = jax.random.split(key, 8)

    x = jax.random.normal(ks[0], (B, N, F_IN), jnp.float32)
    emb = jax.random.normal(ks[1], (N, D), jnp.float32)

    # kNN-style directed graph: node i receives edges from (i+1)%N..(i+3)%N.
    # remove_self_loops + add_self_loops -> dense adjacency adj[i, j] = edge j->i.
    dst = jnp.repeat(jnp.arange(N), 3)
    src = (dst + jnp.tile(jnp.arange(1, 4), N)) % N
    adj = jnp.zeros((N, N), jnp.float32).at[dst, src].set(1.0)
    eye = jnp.eye(N, dtype=jnp.float32)
    adj = adj * (1.0 - eye) + eye

    # Deterministic synthetic parameters (glorot-scale uniform). The PyTorch
    # module zero-inits att_em_* and bias; small random att_em values exercise
    # the embedding path of the attention.
    def glorot(k, shape):
        s = jnp.sqrt(6.0 / (shape[0] + shape[-1]))
        return jax.random.uniform(k, shape, jnp.float32, -s, s)

    w_t = glorot(ks[2], (F_IN, D))                       # lin.weight^T
    att_i = 0.5 * glorot(ks[3], (1, D))[0]
    att_j = 0.5 * glorot(ks[4], (1, D))[0]
    att_em_i = 0.1 * glorot(ks[5], (1, D))[0]
    att_em_j = 0.1 * glorot(ks[6], (1, D))[0]
    bias = jnp.zeros((D,), jnp.float32)                  # GraphLayer bias (zeros init)
    gamma = jnp.ones((D,), jnp.float32)                  # BN default weight
    beta = jnp.zeros((D,), jnp.float32)                  # BN default bias

    out = gnn_layer(x, adj, emb, w_t, att_i, att_j, att_em_i, att_em_j,
                    bias, gamma, beta)
    jax.block_until_ready(out)
    assert out.shape == (B * N, D) and out.dtype == jnp.float32
    assert bool(jnp.all(jnp.isfinite(out)))
    print("KERNEL_OK")
</pallas_src>

<mosaic_0001>
module attributes {stable_mosaic.version = 11 : i64} {
  func.func @graph_attention_kernel(%arg0: i32, %arg1: memref<4x16x8xf32, #tpu.memory_space<vmem>>, %arg2: memref<8x128xf32, #tpu.memory_space<vmem>>, %arg3: memref<128x2xf32, #tpu.memory_space<vmem>>, %arg4: memref<16x2xf32, #tpu.memory_space<vmem>>, %arg5: memref<16x16xf32, #tpu.memory_space<vmem>>, %arg6: memref<4x16x128xf32, #tpu.memory_space<vmem>>, %arg7: memref<1x1x128xf32, #tpu.memory_space<vmem>>, %arg8: memref<1x1x128xf32, #tpu.memory_space<vmem>>) attributes {dimension_semantics = [#tpu.dimension_semantics<parallel>], iteration_bounds = array<i64: 2>, scalar_prefetch = 0 : i64, scratch_operands = 0 : i64, tpu.core_type = #tpu.core_type<tc>, window_params = [{transform_indices = @transform_0, window_bounds = array<i64: 4, 16, 8>}, {pipeline_mode = #tpu.pipeline_mode<synchronous>, transform_indices = @transform_1, window_bounds = array<i64: 8, 128>}, {pipeline_mode = #tpu.pipeline_mode<synchronous>, transform_indices = @transform_2, window_bounds = array<i64: 128, 2>}, {pipeline_mode = #tpu.pipeline_mode<synchronous>, transform_indices = @transform_3, window_bounds = array<i64: 16, 2>}, {pipeline_mode = #tpu.pipeline_mode<synchronous>, transform_indices = @transform_4, window_bounds = array<i64: 16, 16>}, {transform_indices = @transform_5, window_bounds = array<i64: 4, 16, 128>}, {transform_indices = @transform_6, window_bounds = array<i64: 1, 1, 128>}, {transform_indices = @transform_7, window_bounds = array<i64: 1, 1, 128>}]} {
    %c0 = arith.constant 0 : index
    %c0_0 = arith.constant 0 : index
    %c0_1 = arith.constant 0 : index
    %0 = vector.load %arg1[%c0, %c0_0, %c0_1] : memref<4x16x8xf32, #tpu.memory_space<vmem>>, vector<4x16x8xf32>
    %1 = vector.shape_cast %0 : vector<4x16x8xf32> to vector<64x8xf32>
    %c0_2 = arith.constant 0 : index
    %c0_3 = arith.constant 0 : index
    %2 = vector.load %arg2[%c0_2, %c0_3] : memref<8x128xf32, #tpu.memory_space<vmem>>, vector<8x128xf32>
    %cst = arith.constant dense<0.000000e+00> : vector<64x128xf32>
    %3 = tpu.matmul %1, %2, %cst {dimension_numbers = #tpu.dot_dimension_numbers<[1], [0], [0], [1], [0, 0, 1, 1], [], []>} : vector<64x8xf32>, vector<8x128xf32>, vector<64x128xf32> -> vector<64x128xf32>
    %c0_4 = arith.constant 0 : index
    %c0_5 = arith.constant 0 : index
    %4 = vector.load %arg3[%c0_4, %c0_5] : memref<128x2xf32, #tpu.memory_space<vmem>>, vector<128x2xf32>
    %cst_6 = arith.constant dense<0.000000e+00> : vector<64x2xf32>
    %5 = tpu.matmul %3, %4, %cst_6 {dimension_numbers = #tpu.dot_dimension_numbers<[1], [0], [0], [1], [0, 0, 1, 1], [], []>} : vector<64x128xf32>, vector<128x2xf32>, vector<64x2xf32> -> vector<64x2xf32>
    %6 = vector.shape_cast %5 : vector<64x2xf32> to vector<4x16x2xf32>
    %c0_7 = arith.constant 0 : index
    %c0_8 = arith.constant 0 : index
    %7 = vector.load %arg4[%c0_7, %c0_8] : memref<16x2xf32, #tpu.memory_space<vmem>>, vector<16x2xf32>
    %8 = vector.shape_cast %7 : vector<16x2xf32> to vector<1x16x2xf32>
    %9 = vector.broadcast %8 : vector<1x16x2xf32> to vector<4x16x2xf32>
    %10 = arith.addf %6, %9 : vector<4x16x2xf32>
    %11 = tpu.iota {dimensions = array<i32: 2>} : vector<4x16x2xi32>
    %c0_i32 = arith.constant 0 : i32
    %12 = vector.broadcast %c0_i32 : i32 to vector<4x16x2xi32>
    %13 = arith.cmpi eq, %11, %12 : vector<4x16x2xi32>
    %cst_9 = arith.constant 1.000000e+00 : f32
    %14 = vector.broadcast %cst_9 : f32 to vector<4x16x2xf32>
    %15 = arith.select %13, %10, %14 : vector<4x16x2xi1>, vector<4x16x2xf32>
    %c1_i32 = arith.constant 1 : i32
    %16 = vector.broadcast %c1_i32 : i32 to vector<4x16x2xi32>
    %17 = arith.cmpi eq, %11, %16 : vector<4x16x2xi32>
    %cst_10 = arith.constant 1.000000e+00 : f32
    %18 = vector.broadcast %cst_10 : f32 to vector<4x16x2xf32>
    %19 = arith.select %17, %10, %18 : vector<4x16x2xi1>, vector<4x16x2xf32>
    "tpu.trace_start"() <{level = 10 : i32, message = "bic,bjc->bij"}> : () -> ()
    %cst_11 = arith.constant dense<0.000000e+00> : vector<4x16x16xf32>
    %20 = tpu.matmul %15, %19, %cst_11 {dimension_numbers = #tpu.dot_dimension_numbers<[2], [2], [1], [1], [0, 0, 0, 1, 1, 1], [0], [0]>} : vector<4x16x2xf32>, vector<4x16x2xf32>, vector<4x16x16xf32> -> vector<4x16x16xf32>
    %cst_12 = arith.constant 0.000000e+00 : f32
    "tpu.trace_stop"() : () -> ()
    %21 = vector.broadcast %cst_12 : f32 to vector<4x16x16xf32>
    %22 = arith.cmpf ogt, %20, %21 : vector<4x16x16xf32>
    %cst_13 = arith.constant 2.000000e-01 : f32
    %23 = vector.broadcast %cst_13 : f32 to vector<4x16x16xf32>
    %24 = arith.mulf %23, %20 : vector<4x16x16xf32>
    %25 = arith.select %22, %20, %24 : vector<4x16x16xi1>, vector<4x16x16xf32>
    %c0_14 = arith.constant 0 : index
    %c0_15 = arith.constant 0 : index
    %26 = vector.load %arg5[%c0_14, %c0_15] : memref<16x16xf32, #tpu.memory_space<vmem>>, vector<16x16xf32>
    %27 = vector.shape_cast %26 : vector<16x16xf32> to vector<1x16x16xf32>
    %28 = vector.broadcast %27 : vector<1x16x16xf32> to vector<4x16x16xf32>
    %29 = arith.addf %25, %28 : vector<4x16x16xf32>
    %cst_16 = arith.constant dense<0xFF800000> : vector<4x16xf32>
    %30 = vector.multi_reduction <maximumf>, %29, %cst_16 [2] : vector<4x16x16xf32> to vector<4x16xf32>
    %31 = vector.shape_cast %30 : vector<4x16xf32> to vector<4x16x1xf32>
    %32 = vector.broadcast %31 : vector<4x16x1xf32> to vector<4x16x16xf32>
    %33 = arith.subf %29, %32 : vector<4x16x16xf32>
    %34 = math.exp %33 : vector<4x16x16xf32>
    %cst_17 = arith.constant dense<0.000000e+00> : vector<4x16xf32>
    %35 = vector.multi_reduction <add>, %34, %cst_17 [2] : vector<4x16x16xf32> to vector<4x16xf32>
    %36 = vector.shape_cast %35 : vector<4x16xf32> to vector<4x16x1xf32>
    %37 = vector.shape_cast %3 : vector<64x128xf32> to vector<4x16x128xf32>
    %38 = arith.truncf %34 : vector<4x16x16xf32> to vector<4x16x16xbf16>
    %39 = arith.truncf %37 : vector<4x16x128xf32> to vector<4x16x128xbf16>
    "tpu.trace_start"() <{level = 10 : i32, message = "bij,bjd->bid"}> : () -> ()
    %cst_18 = arith.constant dense<0.000000e+00> : vector<4x16x128xf32>
    %40 = tpu.matmul %38, %39, %cst_18 {dimension_numbers = #tpu.dot_dimension_numbers<[2], [1], [1], [2], [0, 0, 0, 1, 1, 2], [0], [0]>} : vector<4x16x16xbf16>, vector<4x16x128xbf16>, vector<4x16x128xf32> -> vector<4x16x128xf32>
    "tpu.trace_stop"() : () -> ()
    %41 = tpu.reciprocal %36 {approx = true} : vector<4x16x1xf32> -> vector<4x16x1xf32>
    %42 = vector.broadcast %41 : vector<4x16x1xf32> to vector<4x16x128xf32>
    %43 = arith.mulf %40, %42 : vector<4x16x128xf32>
    %c0_19 = arith.constant 0 : index
    %c0_20 = arith.constant 0 : index
    %c0_21 = arith.constant 0 : index
    %44 = vector.load %arg6[%c0_19, %c0_20, %c0_21] : memref<4x16x128xf32, #tpu.memory_space<vmem>>, vector<4x16x128xf32>
    tpu.vector_store %arg6[%c0_19, %c0_20, %c0_21], %43 {strides = array<i32>} : memref<4x16x128xf32, #tpu.memory_space<vmem>>, vector<4x16x128xf32>,
    %45 = vector.shape_cast %43 : vector<4x16x128xf32> to vector<64x128xf32>
    %cst_22 = arith.constant dense<0.000000e+00> : vector<128xf32>
    %46 = vector.multi_reduction <add>, %45, %cst_22 [0] : vector<64x128xf32> to vector<128xf32>
    %47 = vector.shape_cast %46 : vector<128xf32> to vector<1x128xf32>
    %c0_23 = arith.constant 0 : index
    %c0_24 = arith.constant 0 : index
    %c0_25 = arith.constant 0 : index
    %48 = vector.load %arg7[%c0_23, %c0_24, %c0_25] : memref<1x1x128xf32, #tpu.memory_space<vmem>>, vector<1x1x128xf32>
    %49 = vector.shape_cast %48 : vector<1x1x128xf32> to vector<1x128xf32>
    %50 = vector.shape_cast %47 : vector<1x128xf32> to vector<1x1x128xf32>
    tpu.vector_store %arg7[%c0_23, %c0_24, %c0_25], %50 {strides = array<i32>} : memref<1x1x128xf32, #tpu.memory_space<vmem>>, vector<1x1x128xf32>,
    %51 = arith.mulf %45, %45 : vector<64x128xf32>
    %cst_26 = arith.constant dense<0.000000e+00> : vector<128xf32>
    %52 = vector.multi_reduction <add>, %51, %cst_26 [0] : vector<64x128xf32> to vector<128xf32>
    %53 = vector.shape_cast %52 : vector<128xf32> to vector<1x128xf32>
    %c0_27 = arith.constant 0 : index
    %c0_28 = arith.constant 0 : index
    %c0_29 = arith.constant 0 : index
    %54 = vector.load %arg8[%c0_27, %c0_28, %c0_29] : memref<1x1x128xf32, #tpu.memory_space<vmem>>, vector<1x1x128xf32>
    %55 = vector.shape_cast %54 : vector<1x1x128xf32> to vector<1x128xf32>
    %56 = vector.shape_cast %53 : vector<1x128xf32> to vector<1x1x128xf32>
    tpu.vector_store %arg8[%c0_27, %c0_28, %c0_29], %56 {strides = array<i32>} : memref<1x1x128xf32, #tpu.memory_space<vmem>>, vector<1x1x128xf32>,
    return
  }
  func.func @transform_0(%arg0: i32) -> (i32, i32, i32) {
    %c0_i32 = arith.constant 0 : i32
    %c0_i32_0 = arith.constant 0 : i32
    %c0_i32_1 = arith.constant 0 : i32
    return %arg0, %c0_i32, %c0_i32_0 : i32, i32, i32
  }
  func.func @transform_1(%arg0: i32) -> (i32, i32) {
    %c0_i32 = arith.constant 0 : i32
    %c0_i32_0 = arith.constant 0 : i32
    %c0_i32_1 = arith.constant 0 : i32
    return %c0_i32, %c0_i32_0 : i32, i32
  }
  func.func @transform_2(%arg0: i32) -> (i32, i32) {
    %c0_i32 = arith.constant 0 : i32
    %c0_i32_0 = arith.constant 0 : i32
    %c0_i32_1 = arith.constant 0 : i32
    return %c0_i32, %c0_i32_0 : i32, i32
  }
  func.func @transform_3(%arg0: i32) -> (i32, i32) {
    %c0_i32 = arith.constant 0 : i32
    %c0_i32_0 = arith.constant 0 : i32
    %c0_i32_1 = arith.constant 0 : i32
    return %c0_i32, %c0_i32_0 : i32, i32
  }
  func.func @transform_4(%arg0: i32) -> (i32, i32) {
    %c0_i32 = arith.constant 0 : i32
    %c0_i32_0 = arith.constant 0 : i32
    %c0_i32_1 = arith.constant 0 : i32
    return %c0_i32, %c0_i32_0 : i32, i32
  }
  func.func @transform_5(%arg0: i32) -> (i32, i32, i32) {
    %c0_i32 = arith.constant 0 : i32
    %c0_i32_0 = arith.constant 0 : i32
    %c0_i32_1 = arith.constant 0 : i32
    return %arg0, %c0_i32, %c0_i32_0 : i32, i32, i32
  }
  func.func @transform_6(%arg0: i32) -> (i32, i32, i32) {
    %c0_i32 = arith.constant 0 : i32
    %c0_i32_0 = arith.constant 0 : i32
    %c0_i32_1 = arith.constant 0 : i32
    return %arg0, %c0_i32, %c0_i32_0 : i32, i32, i32
  }
  func.func @transform_7(%arg0: i32) -> (i32, i32, i32) {
    %c0_i32 = arith.constant 0 : i32
    %c0_i32_0 = arith.constant 0 : i32
    %c0_i32_1 = arith.constant 0 : i32
    return %arg0, %c0_i32, %c0_i32_0 : i32, i32, i32
  }
}

</mosaic_0001>

<llo_original>
// kernel: tpu_custom_call.1
$region0: #{tpu_custom_call.1}
  #allocation0 [shape = 'u32[]', space=smem, size = 0x4, offset = 0x4, fixed_abs, tag = 'smem constant byte address 0x4 - core index']
  #allocation1 [shape = 'u32[144,128]{1,0:T(1,128)}', space=vmem, size = 0x12000, scoped, tag = 'internal scratch']
  %s0 = inlined_call_operand.vmem [shape: f32[8,16,8], index: 0, kind: input, shape index: {}]
  %s1 = inlined_call_operand.vmem [shape: f32[8,128], index: 1, kind: input, shape index: {}]
  %s2 = inlined_call_operand.vmem [shape: f32[128,2], index: 2, kind: input, shape index: {}]
  %s3 = inlined_call_operand.vmem [shape: f32[16,2], index: 3, kind: input, shape index: {}]
  %s4 = inlined_call_operand.vmem [shape: f32[16,16], index: 4, kind: input, shape index: {}]
  %s5 = inlined_call_operand.hbm [shape: f32[8,16,128], index: 5, kind: output, shape index: {0}]
  %s6 = inlined_call_operand.hbm [shape: f32[2,1,128], index: 6, kind: output, shape index: {1}]
  %s7 = inlined_call_operand.hbm [shape: f32[2,1,128], index: 7, kind: output, shape index: {2}]
  %8 = xla_tuple %s5, %s6, %s7
  %s9 = sld [smem:[#allocation0]]
  $region69: #{tpu_custom_call.1} parent=0
    _
  %s11 = ssub.s32 1, %s9
  %s12 = scalar_select 0, %s11, %s9
  $region1: #{tpu_custom_call.1} parent=0
    #allocation2 [shape = 'u8[65536]{0}', space=vmem, size = 0x10000, scoped, tag = 'output window, operand 0']
    #allocation3 [shape = 's32[2]{0}', space=sflag, size = 0x8, scoped, tag = 'scoped memory for tpu_custom_call.1']
    #allocation4 [shape = 'u8[1024]{0}', space=vmem, size = 0x400, scoped, tag = 'output window, operand 1']
    #allocation5 [shape = 's32[2]{0}', space=sflag, size = 0x8, scoped, tag = 'scoped memory for tpu_custom_call.1']
    #allocation6 [shape = 'u8[1024]{0}', space=vmem, size = 0x400, scoped, tag = 'output window, operand 2']
    %13 = vsyncpa [#allocation3], 0
    %s14 = scalar_lea.sflag [#allocation3], 1
    %15 = vsyncpa %s14, 0
    %16 = vsyncpa [#allocation5], 0
    %s17 = scalar_lea.sflag [#allocation5], 1
    %18 = vsyncpa %s17, 0
    loop: start=0, step=1, limit=4
    $region2: #{tpu_custom_call.1} parent=1 // loop_pre_header
      _
    $region3: #{tpu_custom_call.1} parent=1 // loop_header
      %s20 = sphi 0, %s24
      %p21 = scmp.ge.s32.totalorder %s20, 4
      %s30 = sphi 0, %s32
      %s33 = sphi 0, %s30
      %s34 = sphi 0, %s33
      %s50 = sphi 0, %s34
      %s54 = sphi 0, %s54
      %s56 = sphi 0, %s54
      %s57 = sphi 0, %s56
      %s71 = sphi 0, %s57
      %s75 = sphi 0, %s75
      %s77 = sphi 0, %s75
      %s78 = sphi 0, %s77
      %s92 = sphi 0, %s78
      %s96 = sphi 0, %s96
      %s98 = sphi 0, %s96
      %s99 = sphi 0, %s98
      %s113 = sphi 0, %s99
      %s117 = sphi 0, %s117
      %s119 = sphi 0, %s117
      %s120 = sphi 0, %s119
      %s134 = sphi 0, %s120
      %s140 = sphi 0, %s142
      %s143 = sphi 0, %s140
      %s144 = sphi 0, %s143
      %s160 = sphi 0, %s144
      %s166 = sphi 0, %s168
      %s169 = sphi 0, %s166
      %s170 = sphi 0, %s169
      %s186 = sphi 0, %s170
      %s192 = sphi 0, %s194
      %s195 = sphi 0, %s192
      %s196 = sphi 0, %s195
      %s212 = sphi 0, %s196
    $region4: #{tpu_custom_call.1} parent=1 // loop_header_branch
      %23 = sbr.rel (%p21) target = $region8
    $region5: #{tpu_custom_call.1} parent=1 // loop_body
      %s25 = ssub.s32 %s20, 1
      %s26 = ssub.s32 %s20, 2
      %s27 = sadd.s32 %s20, 1
      %s28 = ssub.s32 %s20, %s27
      %p29 = scmp.eq.s32.totalorder %s28, 0
      %s31 = sadd.s32 %s30, 1
      %s32 = scalar_select %p29, %s30, %s31
      %p35 = pneg %p29
      %p36 = scmp.eq.s32.totalorder %s20, 1
      %p37 = por %p35, %p36
      %p38 = scmp.ne.s32.totalorder %s30, %s33
      %p39 = scmp.eq.s32.totalorder %s20, 0
      %p40 = por %p38, %p39
      %p41 = scmp.ne.s32.totalorder %s30, %s33
      %p42 = scmp.eq.s32.totalorder %s25, 1
      %p43 = por %p41, %p42
      %p44 = scmp.ne.s32.totalorder %s33, %s34
      %p45 = scmp.eq.s32.totalorder %s25, 0
      %p46 = por %p44, %p45
      %p47 = scmp.ne.s32.totalorder %s33, %s34
      %p48 = scmp.eq.s32.totalorder %s26, 1
      %p49 = por %p47, %p48
      %p51 = scmp.ne.s32.totalorder %s34, %s50
      %p52 = scmp.eq.s32.totalorder %s26, 0
      %p53 = por %p51, %p52
      %s55 = sadd.s32 %s54, 1
      %p58 = scmp.eq.s32.totalorder %s20, 1
      %p59 = scmp.ne.s32.totalorder %s54, %s56
      %p60 = scmp.eq.s32.totalorder %s20, 0
      %p61 = por %p59, %p60
      %p62 = scmp.ne.s32.totalorder %s54, %s56
      %p63 = scmp.eq.s32.totalorder %s25, 1
      %p64 = por %p62, %p63
      %p65 = scmp.ne.s32.totalorder %s56, %s57
      %p66 = scmp.eq.s32.totalorder %s25, 0
      %p67 = por %p65, %p66
      %p68 = scmp.ne.s32.totalorder %s56, %s57
      %p69 = scmp.eq.s32.totalorder %s26, 1
      %p70 = por %p68, %p69
      %p72 = scmp.ne.s32.totalorder %s57, %s71
      %p73 = scmp.eq.s32.totalorder %s26, 0
      %p74 = por %p72, %p73
      %s76 = sadd.s32 %s75, 1
      %p79 = scmp.eq.s32.totalorder %s20, 1
      %p80 = scmp.ne.s32.totalorder %s75, %s77
      %p81 = scmp.eq.s32.totalorder %s20, 0
      %p82 = por %p80, %p81
      %p83 = scmp.ne.s32.totalorder %s75, %s77
      %p84 = scmp.eq.s32.totalorder %s25, 1
      %p85 = por %p83, %p84
      %p86 = scmp.ne.s32.totalorder %s77, %s78
      %p87 = scmp.eq.s32.totalorder %s25, 0
      %p88 = por %p86, %p87
      %p89 = scmp.ne.s32.totalorder %s77, %s78
      %p90 = scmp.eq.s32.totalorder %s26, 1
      %p91 = por %p89, %p90
      %p93 = scmp.ne.s32.totalorder %s78, %s92
      %p94 = scmp.eq.s32.totalorder %s26, 0
      %p95 = por %p93, %p94
      %s97 = sadd.s32 %s96, 1
      %p100 = scmp.eq.s32.totalorder %s20, 1
      %p101 = scmp.ne.s32.totalorder %s96, %s98
      %p102 = scmp.eq.s32.totalorder %s20, 0
      %p103 = por %p101, %p102
      %p104 = scmp.ne.s32.totalorder %s96, %s98
      %p105 = scmp.eq.s32.totalorder %s25, 1
      %p106 = por %p104, %p105
      %p107 = scmp.ne.s32.totalorder %s98, %s99
      %p108 = scmp.eq.s32.totalorder %s25, 0
      %p109 = por %p107, %p108
      %p110 = scmp.ne.s32.totalorder %s98, %s99
      %p111 = scmp.eq.s32.totalorder %s26, 1
      %p112 = por %p110, %p111
      %p114 = scmp.ne.s32.totalorder %s99, %s113
      %p115 = scmp.eq.s32.totalorder %s26, 0
      %p116 = por %p114, %p115
      %s118 = sadd.s32 %s117, 1
      %p121 = scmp.eq.s32.totalorder %s20, 1
      %p122 = scmp.ne.s32.totalorder %s117, %s119
      %p123 = scmp.eq.s32.totalorder %s20, 0
      %p124 = por %p122, %p123
      %p125 = scmp.ne.s32.totalorder %s117, %s119
      %p126 = scmp.eq.s32.totalorder %s25, 1
      %p127 = por %p125, %p126
      %p128 = scmp.ne.s32.totalorder %s119, %s120
      %p129 = scmp.eq.s32.totalorder %s25, 0
      %p130 = por %p128, %p129
      %p131 = scmp.ne.s32.totalorder %s119, %s120
      %p132 = scmp.eq.s32.totalorder %s26, 1
      %p133 = por %p131, %p132
      %p135 = scmp.ne.s32.totalorder %s120, %s134
      %p136 = scmp.eq.s32.totalorder %s26, 0
      %p137 = por %p135, %p136
      %s138 = ssub.s32 %s20, %s27
      %p139 = scmp.eq.s32.totalorder %s138, 0
      %s141 = sadd.s32 %s140, 1
      %s142 = scalar_select %p139, %s140, %s141
      %p145 = pneg %p139
      %p146 = scmp.eq.s32.totalorder %s20, 1
      %p147 = por %p145, %p146
      %p148 = scmp.ne.s32.totalorder %s140, %s143
      %p149 = scmp.eq.s32.totalorder %s20, 0
      %p150 = por %p148, %p149
      %p151 = scmp.ne.s32.totalorder %s140, %s143
      %p152 = scmp.eq.s32.totalorder %s25, 1
      %p153 = por %p151, %p152
      %p154 = scmp.ne.s32.totalorder %s143, %s144
      %p155 = scmp.eq.s32.totalorder %s25, 0
      %p156 = por %p154, %p155
      %p157 = scmp.ne.s32.totalorder %s143, %s144
      %p158 = scmp.eq.s32.totalorder %s26, 1
      %p159 = por %p157, %p158
      %p161 = scmp.ne.s32.totalorder %s144, %s160
      %p162 = scmp.eq.s32.totalorder %s26, 0
      %p163 = por %p161, %p162
      %s164 = ssub.s32 %s20, %s27
      %p165 = scmp.eq.s32.totalorder %s164, 0
      %s167 = sadd.s32 %s166, 1
      %s168 = scalar_select %p165, %s166, %s167
      %p171 = pneg %p165
      %p172 = scmp.eq.s32.totalorder %s20, 1
      %p173 = por %p171, %p172
      %p174 = scmp.ne.s32.totalorder %s166, %s169
      %p175 = scmp.eq.s32.totalorder %s20, 0
      %p176 = por %p174, %p175
      %p177 = scmp.ne.s32.totalorder %s166, %s169
      %p178 = scmp.eq.s32.totalorder %s25, 1
      %p179 = por %p177, %p178
      %p180 = scmp.ne.s32.totalorder %s169, %s170
      %p181 = scmp.eq.s32.totalorder %s25, 0
      %p182 = por %p180, %p181
      %p183 = scmp.ne.s32.totalorder %s169, %s170
      %p184 = scmp.eq.s32.totalorder %s26, 1
      %p185 = por %p183, %p184
      %p187 = scmp.ne.s32.totalorder %s170, %s186
      %p188 = scmp.eq.s32.totalorder %s26, 0
      %p189 = por %p187, %p188
      %s190 = ssub.s32 %s20, %s27
      %p191 = scmp.eq.s32.totalorder %s190, 0
      %s193 = sadd.s32 %s192, 1
      %s194 = scalar_select %p191, %s192, %s193
      %p197 = pneg %p191
      %p198 = scmp.eq.s32.totalorder %s20, 1
      %p199 = por %p197, %p198
      %p200 = scmp.ne.s32.totalorder %s192, %s195
      %p201 = scmp.eq.s32.totalorder %s20, 0
      %p202 = por %p200, %p201
      %p203 = scmp.ne.s32.totalorder %s192, %s195
      %p204 = scmp.eq.s32.totalorder %s25, 1
      %p205 = por %p203, %p204
      %p206 = scmp.ne.s32.totalorder %s195, %s196
      %p207 = scmp.eq.s32.totalorder %s25, 0
      %p208 = por %p206, %p207
      %p209 = scmp.ne.s32.totalorder %s195, %s196
      %p210 = scmp.eq.s32.totalorder %s26, 1
      %p211 = por %p209, %p210
      %p213 = scmp.ne.s32.totalorder %s196, %s212
      %p214 = scmp.eq.s32.totalorder %s26, 0
      %p215 = por %p213, %p214
      %p216 = scmp.le.s32.totalorder 1, %s20
      %p217 = scmp.lt.s32.totalorder %s20, 3
      %p218 = pnand %p216, %p217
      %p219 = pneg %p218
      // Predicated region
      $region9: #{tpu_custom_call.1} parent=5 // pred_check
        _
      $region10: #{tpu_custom_call.1} parent=5 // pred_check_branch
        %221 = sbr.rel (%p218) target = $region12
      $region11: #{tpu_custom_call.1} parent=5 // pred_region
        %s222 = ssub.s32 %s20, 1
        // Predicated region
        $region13: #{tpu_custom_call.1} parent=11 // pred_check
          %p223 = pneg %p67
        $region14: #{tpu_custom_call.1} parent=11 // pred_check_branch
          %225 = sbr.rel (%p223) target = $region16
        $region15: #{tpu_custom_call.1} parent=11 // pred_region
          _
        $region16: #{tpu_custom_call.1} parent=11 // pred_fallthru
          _
        // Predicated region
        $region17: #{tpu_custom_call.1} parent=11 // pred_check
          %p226 = pneg %p88
        $region18: #{tpu_custom_call.1} parent=11 // pred_check_branch
          %228 = sbr.rel (%p226) target = $region20
        $region19: #{tpu_custom_call.1} parent=11 // pred_region
          _
        $region20: #{tpu_custom_call.1} parent=11 // pred_fallthru
          _
        // Predicated region
        $region21: #{tpu_custom_call.1} parent=11 // pred_check
          %p229 = pneg %p109
        $region22: #{tpu_custom_call.1} parent=11 // pred_check_branch
          %231 = sbr.rel (%p229) target = $region24
        $region23: #{tpu_custom_call.1} parent=11 // pred_region
          _
        $region24: #{tpu_custom_call.1} parent=11 // pred_fallthru
          _
        // Predicated region
        $region25: #{tpu_custom_call.1} parent=11 // pred_check
          %p232 = pneg %p130
        $region26: #{tpu_custom_call.1} parent=11 // pred_check_branch
          %234 = sbr.rel (%p232) target = $region28
        $region27: #{tpu_custom_call.1} parent=11 // pred_region
          _
        $region28: #{tpu_custom_call.1} parent=11 // pred_fallthru
          _
      $region12: #{tpu_custom_call.1} parent=5 // pred_fallthru
        _
      %p235 = scmp.lt.s32.totalorder %s20, 2
      // Predicated region
      $region29: #{tpu_custom_call.1} parent=5 // pred_check
        %p236 = pneg %p235
      $region30: #{tpu_custom_call.1} parent=5 // pred_check_branch
        %238 = sbr.rel (%p236) target = $region32
      $region31: #{tpu_custom_call.1} parent=5 // pred_region
        // Predicated region
        $region33: #{tpu_custom_call.1} parent=31 // pred_check
          %p239 = pneg %p40
        $region34: #{tpu_custom_call.1} parent=31 // pred_check_branch
          %241 = sbr.rel (%p239) target = $region36
        $region35: #{tpu_custom_call.1} parent=31 // pred_region
          %s242 = smul.u32 4, %s20
          %p243 = scmp.lt.s32.totalorder %s242, 7
          %s244 = scalar_select %p243, %s242, 7
          %s245 = smul.addr %s244, 2
          %s246 = smul.addr %s245, 8
          %s247 = scalar_lea.vmem %s0, %s246
          %s248 = smul.u32 4, %s20
        $region36: #{tpu_custom_call.1} parent=31 // pred_fallthru
          _
      $region32: #{tpu_custom_call.1} parent=5 // pred_fallthru
        _
      %p249 = scmp.le.s32.totalorder 1, %s20
      %p250 = scmp.lt.s32.totalorder %s20, 3
      %p251 = pnand %p249, %p250
      %p252 = pneg %p251
      // Predicated region
      $region37: #{tpu_custom_call.1} parent=5 // pred_check
        _
      $region38: #{tpu_custom_call.1} parent=5 // pred_check_branch
        %254 = sbr.rel (%p251) target = $region40
      $region39: #{tpu_custom_call.1} parent=5 // pred_region
        %s255 = ssub.s32 %s20, 1
        %s256 = smul.u32 4, %s25
        %p257 = scmp.lt.s32.totalorder %s256, 7
        %s258 = scalar_select %p257, %s256, 7
        %s259 = smul.addr %s258, 2
        %s260 = smul.addr %s259, 8
        %s261 = scalar_lea.vmem %s0, %s260
        %p262 = pneg %p46
        %p263 = pneg %p43
        %p264 = pneg %p67
        %p265 = pneg %p64
        %p266 = pneg %p88
        %p267 = pneg %p85
        %p268 = pneg %p109
        %p269 = pneg %p106
        %p270 = pneg %p130
        %p271 = pneg %p127
        %p272 = pneg %p156
        %p273 = pneg %p153
        %s274 = sand.u32 %s143, 1
        %s275 = scalar_lea.sflag [#allocation3], %s274
        %s276 = sand.u32 %s143, 1
        %s277 = smul.addr %s276, 64
        %s278 = scalar_lea.vmem [#allocation2], %s277
        %p279 = pneg %p182
        %p280 = pneg %p179
        %s281 = sand.u32 %s25, 1
        %s282 = scalar_lea.sflag [#allocation5], %s281
        %s283 = sand.u32 %s169, 1
        %s284 = scalar_lea.vmem [#allocation4], %s283
        %p285 = pneg %p208
        %p286 = pneg %p205
        %s287 = sand.u32 %s25, 1
        %s288 = scalar_lea.sflag [#allocation5], %s287
        %s289 = sand.u32 %s195, 1
        %s290 = scalar_lea.vmem [#allocation6], %s289
        %s291 = smul.u32 4, %s25
        %p292 = scmp.lt.s32.totalorder %s291, 7
        %s293 = scalar_select %p292, %s291, 7
        %s294 = smul.addr %s293, 2
        %s295 = smul.addr %s294, 8
        %s296 = scalar_lea.vmem %s0, %s295
        %s297 = smul.u32 4, %s25
        %s298 = smul.u32 4, %s25
        %v300 = vld [vmem:[%s296] sm:$0xff]
        %v301 = vld [vmem:[%s296 + $0x8] sm:$0xff]
        %v302 = vld [vmem:[%s296 + $0x10] sm:$0xff]
        %v303 = vld [vmem:[%s296 + $0x18] sm:$0xff]
        %v304 = vld [vmem:[%s296 + $0x20] sm:$0xff]
        %v305 = vld [vmem:[%s296 + $0x28] sm:$0xff]
        %v306 = vld [vmem:[%s296 + $0x30] sm:$0xff]
        %v307 = vld [vmem:[%s296 + $0x38] sm:$0xff]
        %v308 = vld [vmem:[%s1] sm:$0xff]
        %vm309 = vcmask 64512
        %v311 = vsel %vm309, %v300, 0
        %v314 = vsel %vm309, %v301, 0
        %v317 = vsel %vm309, %v302, 0
        %v320 = vsel %vm309, %v303, 0
        %v323 = vsel %vm309, %v304, 0
        %v326 = vsel %vm309, %v305, 0
        %v329 = vsel %vm309, %v306, 0
        %v332 = vsel %vm309, %v307, 0
        %334 = vmatprep.subr.mxu0 0.0
        %335 = vmatpush1.msra.mxu0 %v308
        %336 = vmatprep.subr.mxu0 0.0
        %337 = vmatpush1.msra.mxu0 0.0
        %338 = vmatprep.subr.mxu0 0.0
        %339 = vmatpush1.msra.mxu0 0.0
        %340 = vmatprep.subr.mxu0 0.0
        %341 = vmatpush1.msra.mxu0 0.0
        %342 = vmatprep.subr.mxu0 0.0
        %343 = vmatpush1.msra.mxu0 0.0
        %344 = vmatprep.subr.mxu0 0.0
        %345 = vmatpush1.msra.mxu0 0.0
        %346 = vmatprep.subr.mxu0 0.0
        %347 = vmatpush1.msra.mxu0 0.0
        %348 = vmatprep.subr.mxu0 0.0
        %349 = vmatpush1.msra.mxu0 0.0
        %350 = vmatprep.subr.mxu0 0.0
        %351 = vmatpush1.msra.mxu0 0.0
        %352 = vmatprep.subr.mxu0 0.0
        %353 = vmatpush1.msra.mxu0 0.0
        %354 = vmatprep.subr.mxu0 0.0
        %355 = vmatpush1.msra.mxu0 0.0
        %356 = vmatprep.subr.mxu0 0.0
        %357 = vmatpush1.msra.mxu0 0.0
        %358 = vmatprep.subr.mxu0 0.0
        %359 = vmatpush1.msra.mxu0 0.0
        %360 = vmatprep.subr.mxu0 0.0
        %361 = vmatpush1.msra.mxu0 0.0
        %362 = vmatprep.subr.mxu0 0.0
        %363 = vmatpush1.msra.mxu0 0.0
        %364 = vmatprep.subr.mxu0 0.0
        %365 = vmatpush1.msra.mxu0 0.0
        %366 = vmatprep.subr.mxu0 0.0
        %367 = vmatpush1.msra.mxu0 0.0
        %368 = vmatprep.subr.mxu0 0.0
        %369 = vmatpush1.msra.mxu0 0.0
        %370 = vmatprep.subr.mxu0 0.0
        %371 = vmatpush1.msra.mxu0 0.0
        %372 = vmatprep.subr.mxu0 0.0
        %373 = vmatpush1.msra.mxu0 0.0
        %374 = vmatprep.subr.mxu0 0.0
        %375 = vmatpush1.msra.mxu0 0.0
        %376 = vmatprep.subr.mxu0 0.0
        %377 = vmatpush1.msra.mxu0 0.0
        %378 = vmatprep.subr.mxu0 0.0
        %379 = vmatpush1.msra.mxu0 0.0
        %380 = vmatprep.subr.mxu0 0.0
        %381 = vmatpush1.msra.mxu0 0.0
        %382 = vmatprep.subr.mxu0 0.0
        %383 = vmatpush1.msra.mxu0 0.0
        %384 = vmatprep.subr.mxu0 0.0
        %385 = vmatpush1.msra.mxu0 0.0
        %386 = vmatprep.subr.mxu0 0.0
        %387 = vmatpush1.msra.mxu0 0.0
        %388 = vmatprep.subr.mxu0 0.0
        %389 = vmatpush1.msra.mxu0 0.0
        %390 = vmatprep.subr.mxu0 0.0
        %391 = vmatpush1.msra.mxu0 0.0
        %392 = vmatprep.subr.mxu0 0.0
        %393 = vmatpush1.msra.mxu0 0.0
        %394 = vmatprep.subr.mxu0 0.0
        %395 = vmatpush1.msra.mxu0 0.0
        %396 = vmatprep.subr.mxu0 0.0
        %397 = vmatpush1.msra.mxu0 0.0
        %398 = vmatprep.mubr.f32.mxu0 0.0
        %399 = vmatmul.mubr.f32.gmra.mrb[0].mxu0 %v311
        %v400 = vpop.f32.mrb[0].mxu0
        %v401 = vadd.f32 0.0, %v400
        %v402 = vpop.f32.mrb[0].mxu0
        %403 = vmatprep.mubr.f32.mxu0 0.0
        %404 = vmatmul.mubr.f32.gmra.mrb[0].mxu0 %v314
        %v405 = vpop.f32.mrb[0].mxu0
        %v406 = vadd.f32 0.0, %v405
        %v407 = vpop.f32.mrb[0].mxu0
        %408 = vmatprep.mubr.f32.mxu0 0.0
        %409 = vmatmul.mubr.f32.gmra.mrb[0].mxu0 %v317
        %v410 = vpop.f32.mrb[0].mxu0
        %v411 = vadd.f32 0.0, %v410
        %v412 = vpop.f32.mrb[0].mxu0
        %413 = vmatprep.mubr.f32.mxu0 0.0
        %414 = vmatmul.mubr.f32.gmra.mrb[0].mxu0 %v320
        %v415 = vpop.f32.mrb[0].mxu0
        %v416 = vadd.f32 0.0, %v415
        %v417 = vpop.f32.mrb[0].mxu0
        %418 = vmatprep.mubr.f32.mxu0 0.0
        %419 = vmatmul.mubr.f32.gmra.mrb[0].mxu0 %v323
        %v420 = vpop.f32.mrb[0].mxu0
        %v421 = vadd.f32 0.0, %v420
        %v422 = vpop.f32.mrb[0].mxu0
        %423 = vmatprep.mubr.f32.mxu0 0.0
        %424 = vmatmul.mubr.f32.gmra.mrb[0].mxu0 %v326
        %v425 = vpop.f32.mrb[0].mxu0
        %v426 = vadd.f32 0.0, %v425
        %v427 = vpop.f32.mrb[0].mxu0
        %428 = vmatprep.mubr.f32.mxu0 0.0
        %429 = vmatmul.mubr.f32.gmra.mrb[0].mxu0 %v329
        %v430 = vpop.f32.mrb[0].mxu0
        %v431 = vadd.f32 0.0, %v430
        %v432 = vpop.f32.mrb[0].mxu0
        %433 = vmatprep.mubr.f32.mxu0 0.0
        %434 = vmatmul.mubr.f32.gmra.mrb[0].mxu0 %v332
        %v435 = vpop.f32.mrb[0].mxu0
        %v436 = vadd.f32 0.0, %v435
        %v437 = vpop.f32.mrb[0].mxu0
        %438 = vdwg.mxu0
        %v439 = vld [vmem:[%s2] sm:$0xff]
        %v440 = vld [vmem:[%s2 + $0x8] sm:$0xff]
        %v441 = vld [vmem:[%s2 + $0x10] sm:$0xff]
        %v442 = vld [vmem:[%s2 + $0x18] sm:$0xff]
        %v443 = vld [vmem:[%s2 + $0x20] sm:$0xff]
        %v444 = vld [vmem:[%s2 + $0x28] sm:$0xff]
        %v445 = vld [vmem:[%s2 + $0x30] sm:$0xff]
        %v446 = vld [vmem:[%s2 + $0x38] sm:$0xff]
        %v447 = vld [vmem:[%s2 + $0x40] sm:$0xff]
        %v448 = vld [vmem:[%s2 + $0x48] sm:$0xff]
        %v449 = vld [vmem:[%s2 + $0x50] sm:$0xff]
        %v450 = vld [vmem:[%s2 + $0x58] sm:$0xff]
        %v451 = vld [vmem:[%s2 + $0x60] sm:$0xff]
        %v452 = vld [vmem:[%s2 + $0x68] sm:$0xff]
        %v453 = vld [vmem:[%s2 + $0x70] sm:$0xff]
        %v454 = vld [vmem:[%s2 + $0x78] sm:$0xff]
        %455 = vmatprep.subr.mxu0 0.0
        %456 = vmatpush1.msra.mxu0 %v439
        %457 = vmatprep.subr.mxu0 0.0
        %458 = vmatpush1.msra.mxu0 %v440
        %459 = vmatprep.subr.mxu0 0.0
        %460 = vmatpush1.msra.mxu0 %v441
        %461 = vmatprep.subr.mxu0 0.0
        %462 = vmatpush1.msra.mxu0 %v442
        %463 = vmatprep.subr.mxu0 0.0
        %464 = vmatpush1.msra.mxu0 %v443
        %465 = vmatprep.subr.mxu0 0.0
        %466 = vmatpush1.msra.mxu0 %v444
        %467 = vmatprep.subr.mxu0 0.0
        %468 = vmatpush1.msra.mxu0 %v445
        %469 = vmatprep.subr.mxu0 0.0
        %470 = vmatpush1.msra.mxu0 %v446
        %471 = vmatprep.subr.mxu0 0.0
        %472 = vmatpush1.msra.mxu0 %v447
        %473 = vmatprep.subr.mxu0 0.0
        %474 = vmatpush1.msra.mxu0 %v448
        %475 = vmatprep.subr.mxu0 0.0
        %476 = vmatpush1.msra.mxu0 %v449
        %477 = vmatprep.subr.mxu0 0.0
        %478 = vmatpush1.msra.mxu0 %v450
        %479 = vmatprep.subr.mxu0 0.0
        %480 = vmatpush1.msra.mxu0 %v451
        %481 = vmatprep.subr.mxu0 0.0
        %482 = vmatpush1.msra.mxu0 %v452
        %483 = vmatprep.subr.mxu0 0.0
        %484 = vmatpush1.msra.mxu0 %v453
        %485 = vmatprep.subr.mxu0 0.0
        %486 = vmatpush1.msra.mxu0 %v454
        %487 = vmatprep.subr.mxu0 0.0
        %488 = vmatpush1.msra.mxu0 0.0
        %489 = vmatprep.subr.mxu0 0.0
        %490 = vmatpush1.msra.mxu0 0.0
        %491 = vmatprep.subr.mxu0 0.0
        %492 = vmatpush1.msra.mxu0 0.0
        %493 = vmatprep.subr.mxu0 0.0
        %494 = vmatpush1.msra.mxu0 0.0
        %495 = vmatprep.subr.mxu0 0.0
        %496 = vmatpush1.msra.mxu0 0.0
        %497 = vmatprep.subr.mxu0 0.0
        %498 = vmatpush1.msra.mxu0 0.0
        %499 = vmatprep.subr.mxu0 0.0
        %500 = vmatpush1.msra.mxu0 0.0
        %501 = vmatprep.subr.mxu0 0.0
        %502 = vmatpush1.msra.mxu0 0.0
        %503 = vmatprep.subr.mxu0 0.0
        %504 = vmatpush1.msra.mxu0 0.0
        %505 = vmatprep.subr.mxu0 0.0
        %506 = vmatpush1.msra.mxu0 0.0
        %507 = vmatprep.subr.mxu0 0.0
        %508 = vmatpush1.msra.mxu0 0.0
        %509 = vmatprep.subr.mxu0 0.0
        %510 = vmatpush1.msra.mxu0 0.0
        %511 = vmatprep.subr.mxu0 0.0
        %512 = vmatpush1.msra.mxu0 0.0
        %513 = vmatprep.subr.mxu0 0.0
        %514 = vmatpush1.msra.mxu0 0.0
        %515 = vmatprep.subr.mxu0 0.0
        %516 = vmatpush1.msra.mxu0 0.0
        %517 = vmatprep.subr.mxu0 0.0
        %518 = vmatpush1.msra.mxu0 0.0
        %519 = vmatprep.mubr.f32.mxu0 0.0
        %520 = vmatmul.mubr.f32.gmra.mrb[0].mxu0 %v401
        %v521 = vpop.f32.mrb[0].mxu0
        %v522 = vadd.f32 0.0, %v521
        %v523 = vpop.f32.mrb[0].mxu0
        %524 = vmatprep.mubr.f32.mxu0 0.0
        %525 = vmatmul.mubr.f32.gmra.mrb[0].mxu0 %v406
        %v526 = vpop.f32.mrb[0].mxu0
        %v527 = vadd.f32 0.0, %v526
        %v528 = vpop.f32.mrb[0].mxu0
        %529 = vmatprep.mubr.f32.mxu0 0.0
        %530 = vmatmul.mubr.f32.gmra.mrb[0].mxu0 %v411
        %v531 = vpop.f32.mrb[0].mxu0
        %v532 = vadd.f32 0.0, %v531
        %v533 = vpop.f32.mrb[0].mxu0
        %534 = vmatprep.mubr.f32.mxu0 0.0
        %535 = vmatmul.mubr.f32.gmra.mrb[0].mxu0 %v416
        %v536 = vpop.f32.mrb[0].mxu0
        %v537 = vadd.f32 0.0, %v536
        %v538 = vpop.f32.mrb[0].mxu0
        %539 = vmatprep.mubr.f32.mxu0 0.0
        %540 = vmatmul.mubr.f32.gmra.mrb[0].mxu0 %v421
        %v541 = vpop.f32.mrb[0].mxu0
        %v542 = vadd.f32 0.0, %v541
        %v543 = vpop.f32.mrb[0].mxu0
        %544 = vmatprep.mubr.f32.mxu0 0.0
        %545 = vmatmul.mubr.f32.gmra.mrb[0].mxu0 %v426
        %v546 = vpop.f32.mrb[0].mxu0
        %v547 = vadd.f32 0.0, %v546
        %v548 = vpop.f32.mrb[0].mxu0
        %549 = vmatprep.mubr.f32.mxu0 0.0
        %550 = vmatmul.mubr.f32.gmra.mrb[0].mxu0 %v431
        %v551 = vpop.f32.mrb[0].mxu0
        %v552 = vadd.f32 0.0, %v551
        %v553 = vpop.f32.mrb[0].mxu0
        %554 = vmatprep.mubr.f32.mxu0 0.0
        %555 = vmatmul.mubr.f32.gmra.mrb[0].mxu0 %v436
        %v556 = vpop.f32.mrb[0].mxu0
        %v557 = vadd.f32 0.0, %v556
        %v558 = vpop.f32.mrb[0].mxu0
        %559 = vdwg.mxu0
        %v560 = vld [vmem:[%s3] sm:$0xff]
        %v561 = vld [vmem:[%s3 + $0x8] sm:$0xff]
        %v562 = vadd.f32 %v522, %v560
        %v563 = vadd.f32 %v527, %v561
        %v564 = vadd.f32 %v532, %v560
        %v565 = vadd.f32 %v537, %v561
        %v566 = vadd.f32 %v542, %v560
        %v567 = vadd.f32 %v547, %v561
        %v568 = vadd.f32 %v552, %v560
        %v569 = vadd.f32 %v557, %v561
        %v570 = vlaneseq
        %v571 = vand.u32 %v570, 127
        %vm572 = vcmp.eq.s32.totalorder %v571, 0
        %v573 = vsel %vm572, %v562, 1.0
        %v574 = vsel %vm572, %v563, 1.0
        %v575 = vsel %vm572, %v564, 1.0
        %v576 = vsel %vm572, %v565, 1.0
        %v577 = vsel %vm572, %v566, 1.0
        %v578 = vsel %vm572, %v567, 1.0
        %v579 = vsel %vm572, %v568, 1.0
        %v580 = vsel %vm572, %v569, 1.0
        %vm581 = vcmp.eq.s32.totalorder %v571, 1
        %v582 = vsel %vm581, %v562, 1.0
        %v583 = vsel %vm581, %v563, 1.0
        %v584 = vsel %vm581, %v564, 1.0
        %v585 = vsel %vm581, %v565, 1.0
        %v586 = vsel %vm581, %v566, 1.0
        %v587 = vsel %vm581, %v567, 1.0
        %v588 = vsel %vm581, %v568, 1.0
        %v589 = vsel %vm581, %v569, 1.0
        %vm590 = vcmask 15360
        %v592 = vsel %vm590, %v573, 0
        %v595 = vsel %vm590, %v574, 0
        %v598 = vsel %vm590, %v582, 0
        %v601 = vsel %vm590, %v583, 0
        %603 = vmatprep.subr.mxu0 0.0
        %604 = vmatpush1.xpose.msra.mxu0 %v598
        %605 = vmatprep.subr.mxu0 0.0
        %606 = vmatpush1.xpose.msra.mxu0 %v601
        %607 = vmatprep.subr.mxu0 0.0
        %608 = vmatpush1.xpose.msra.mxu0 0.0
        %609 = vmatprep.subr.mxu0 0.0
        %610 = vmatpush1.xpose.msra.mxu0 0.0
        %611 = vmatprep.subr.mxu0 0.0
        %612 = vmatpush1.xpose.msra.mxu0 0.0
        %613 = vmatprep.subr.mxu0 0.0
        %614 = vmatpush1.xpose.msra.mxu0 0.0
        %615 = vmatprep.subr.mxu0 0.0
        %616 = vmatpush1.xpose.msra.mxu0 0.0
        %617 = vmatprep.subr.mxu0 0.0
        %618 = vmatpush1.xpose.msra.mxu0 0.0
        %619 = vmatprep.subr.mxu0 0.0
        %620 = vmatpush1.xpose.msra.mxu0 0.0
        %621 = vmatprep.subr.mxu0 0.0
        %622 = vmatpush1.xpose.msra.mxu0 0.0
        %623 = vmatprep.subr.mxu0 0.0
        %624 = vmatpush1.xpose.msra.mxu0 0.0
        %625 = vmatprep.subr.mxu0 0.0
        %626 = vmatpush1.xpose.msra.mxu0 0.0
        %627 = vmatprep.subr.mxu0 0.0
        %628 = vmatpush1.xpose.msra.mxu0 0.0
        %629 = vmatprep.subr.mxu0 0.0
        %630 = vmatpush1.xpose.msra.mxu0 0.0
        %631 = vmatprep.subr.mxu0 0.0
        %632 = vmatpush1.xpose.msra.mxu0 0.0
        %633 = vmatprep.subr.mxu0 0.0
        %634 = vmatpush1.xpose.msra.mxu0 0.0
        %635 = vmatprep.subr.mxu0 0.0
        %636 = vmatpush1.xpose.msra.mxu0 0.0
        %637 = vmatprep.subr.mxu0 0.0
        %638 = vmatpush1.xpose.msra.mxu0 0.0
        %639 = vmatprep.subr.mxu0 0.0
        %640 = vmatpush1.xpose.msra.mxu0 0.0
        %641 = vmatprep.subr.mxu0 0.0
        %642 = vmatpush1.xpose.msra.mxu0 0.0
        %643 = vmatprep.subr.mxu0 0.0
        %644 = vmatpush1.xpose.msra.mxu0 0.0
        %645 = vmatprep.subr.mxu0 0.0
        %646 = vmatpush1.xpose.msra.mxu0 0.0
        %647 = vmatprep.subr.mxu0 0.0
        %648 = vmatpush1.xpose.msra.mxu0 0.0
        %649 = vmatprep.subr.mxu0 0.0
        %650 = vmatpush1.xpose.msra.mxu0 0.0
        %651 = vmatprep.subr.mxu0 0.0
        %652 = vmatpush1.xpose.msra.mxu0 0.0
        %653 = vmatprep.subr.mxu0 0.0
        %654 = vmatpush1.xpose.msra.mxu0 0.0
        %655 = vmatprep.subr.mxu0 0.0
        %656 = vmatpush1.xpose.msra.mxu0 0.0
        %657 = vmatprep.subr.mxu0 0.0
        %658 = vmatpush1.xpose.msra.mxu0 0.0
        %659 = vmatprep.subr.mxu0 0.0
        %660 = vmatpush1.xpose.msra.mxu0 0.0
        %661 = vmatprep.subr.mxu0 0.0
        %662 = vmatpush1.xpose.msra.mxu0 0.0
        %663 = vmatprep.subr.mxu0 0.0
        %664 = vmatpush1.xpose.msra.mxu0 0.0
        %665 = vmatprep.subr.mxu0 0.0
        %666 = vmatpush1.xpose.msra.mxu0 0.0
        %667 = vmatprep.mubr.f32.mxu0 0.0
        %668 = vmatmul.mubr.f32.gmra.mrb[0].mxu0 %v592
        %v669 = vpop.f32.mrb[0].mxu0
        %v670 = vadd.f32 0.0, %v669
        %v671 = vpop.f32.mrb[0].mxu0
        %672 = vmatprep.mubr.f32.mxu0 0.0
        %673 = vmatmul.mubr.f32.gmra.mrb[0].mxu0 %v595
        %v674 = vpop.f32.mrb[0].mxu0
        %v675 = vadd.f32 0.0, %v674
        %v676 = vpop.f32.mrb[0].mxu0
        %677 = vdwg.mxu0
        %v679 = vsel %vm590, %v575, 0
        %v682 = vsel %vm590, %v576, 0
        %v685 = vsel %vm590, %v584, 0
        %v688 = vsel %vm590, %v585, 0
        %690 = vmatprep.subr.mxu0 0.0
        %691 = vmatpush1.xpose.msra.mxu0 %v685
        %692 = vmatprep.subr.mxu0 0.0
        %693 = vmatpush1.xpose.msra.mxu0 %v688
        %694 = vmatprep.subr.mxu0 0.0
        %695 = vmatpush1.xpose.msra.mxu0 0.0
        %696 = vmatprep.subr.mxu0 0.0
        %697 = vmatpush1.xpose.msra.mxu0 0.0
        %698 = vmatprep.subr.mxu0 0.0
        %699 = vmatpush1.xpose.msra.mxu0 0.0
        %700 = vmatprep.subr.mxu0 0.0
        %701 = vmatpush1.xpose.msra.mxu0 0.0
        %702 = vmatprep.subr.mxu0 0.0
        %703 = vmatpush1.xpose.msra.mxu0 0.0
        %704 = vmatprep.subr.mxu0 0.0
        %705 = vmatpush1.xpose.msra.mxu0 0.0
        %706 = vmatprep.subr.mxu0 0.0
        %707 = vmatpush1.xpose.msra.mxu0 0.0
        %708 = vmatprep.subr.mxu0 0.0
        %709 = vmatpush1.xpose.msra.mxu0 0.0
        %710 = vmatprep.subr.mxu0 0.0
        %711 = vmatpush1.xpose.msra.mxu0 0.0
        %712 = vmatprep.subr.mxu0 0.0
        %713 = vmatpush1.xpose.msra.mxu0 0.0
        %714 = vmatprep.subr.mxu0 0.0
        %715 = vmatpush1.xpose.msra.mxu0 0.0
        %716 = vmatprep.subr.mxu0 0.0
        %717 = vmatpush1.xpose.msra.mxu0 0.0
        %718 = vmatprep.subr.mxu0 0.0
        %719 = vmatpush1.xpose.msra.mxu0 0.0
        %720 = vmatprep.subr.mxu0 0.0
        %721 = vmatpush1.xpose.msra.mxu0 0.0
        %722 = vmatprep.subr.mxu0 0.0
        %723 = vmatpush1.xpose.msra.mxu0 0.0
        %724 = vmatprep.subr.mxu0 0.0
        %725 = vmatpush1.xpose.msra.mxu0 0.0
        %726 = vmatprep.subr.mxu0 0.0
        %727 = vmatpush1.xpose.msra.mxu0 0.0
        %728 = vmatprep.subr.mxu0 0.0
        %729 = vmatpush1.xpose.msra.mxu0 0.0
        %730 = vmatprep.subr.mxu0 0.0
        %731 = vmatpush1.xpose.msra.mxu0 0.0
        %732 = vmatprep.subr.mxu0 0.0
        %733 = vmatpush1.xpose.msra.mxu0 0.0
        %734 = vmatprep.subr.mxu0 0.0
        %735 = vmatpush1.xpose.msra.mxu0 0.0
        %736 = vmatprep.subr.mxu0 0.0
        %737 = vmatpush1.xpose.msra.mxu0 0.0
        %738 = vmatprep.subr.mxu0 0.0
        %739 = vmatpush1.xpose.msra.mxu0 0.0
        %740 = vmatprep.subr.mxu0 0.0
        %741 = vmatpush1.xpose.msra.mxu0 0.0
        %742 = vmatprep.subr.mxu0 0.0
        %743 = vmatpush1.xpose.msra.mxu0 0.0
        %744 = vmatprep.subr.mxu0 0.0
        %745 = vmatpush1.xpose.msra.mxu0 0.0
        %746 = vmatprep.subr.mxu0 0.0
        %747 = vmatpush1.xpose.msra.mxu0 0.0
        %748 = vmatprep.subr.mxu0 0.0
        %749 = vmatpush1.xpose.msra.mxu0 0.0
        %750 = vmatprep.subr.mxu0 0.0
        %751 = vmatpush1.xpose.msra.mxu0 0.0
        %752 = vmatprep.subr.mxu0 0.0
        %753 = vmatpush1.xpose.msra.mxu0 0.0
        %754 = vmatprep.mubr.f32.mxu0 0.0
        %755 = vmatmul.mubr.f32.gmra.mrb[0].mxu0 %v679
        %v756 = vpop.f32.mrb[0].mxu0
        %v757 = vadd.f32 0.0, %v756
        %v758 = vpop.f32.mrb[0].mxu0
        %759 = vmatprep.mubr.f32.mxu0 0.0
        %760 = vmatmul.mubr.f32.gmra.mrb[0].mxu0 %v682
        %v761 = vpop.f32.mrb[0].mxu0
        %v762 = vadd.f32 0.0, %v761
        %v763 = vpop.f32.mrb[0].mxu0
        %764 = vdwg.mxu0
        %v766 = vsel %vm590, %v577, 0
        %v769 = vsel %vm590, %v578, 0
        %v772 = vsel %vm590, %v586, 0
        %v775 = vsel %vm590, %v587, 0
        %777 = vmatprep.subr.mxu0 0.0
        %778 = vmatpush1.xpose.msra.mxu0 %v772
        %779 = vmatprep.subr.mxu0 0.0
        %780 = vmatpush1.xpose.msra.mxu0 %v775
        %781 = vmatprep.subr.mxu0 0.0
        %782 = vmatpush1.xpose.msra.mxu0 0.0
        %783 = vmatprep.subr.mxu0 0.0
        %784 = vmatpush1.xpose.msra.mxu0 0.0
        %785 = vmatprep.subr.mxu0 0.0
        %786 = vmatpush1.xpose.msra.mxu0 0.0
        %787 = vmatprep.subr.mxu0 0.0
        %788 = vmatpush1.xpose.msra.mxu0 0.0
        %789 = vmatprep.subr.mxu0 0.0
        %790 = vmatpush1.xpose.msra.mxu0 0.0
        %791 = vmatprep.subr.mxu0 0.0
        %792 = vmatpush1.xpose.msra.mxu0 0.0
        %793 = vmatprep.subr.mxu0 0.0
        %794 = vmatpush1.xpose.msra.mxu0 0.0
        %795 = vmatprep.subr.mxu0 0.0
        %796 = vmatpush1.xpose.msra.mxu0 0.0
        %797 = vmatprep.subr.mxu0 0.0
        %798 = vmatpush1.xpose.msra.mxu0 0.0
        %799 = vmatprep.subr.mxu0 0.0
        %800 = vmatpush1.xpose.msra.mxu0 0.0
        %801 = vmatprep.subr.mxu0 0.0
        %802 = vmatpush1.xpose.msra.mxu0 0.0
        %803 = vmatprep.subr.mxu0 0.0
        %804 = vmatpush1.xpose.msra.mxu0 0.0
        %805 = vmatprep.subr.mxu0 0.0
        %806 = vmatpush1.xpose.msra.mxu0 0.0
        %807 = vmatprep.subr.mxu0 0.0
        %808 = vmatpush1.xpose.msra.mxu0 0.0
        %809 = vmatprep.subr.mxu0 0.0
        %810 = vmatpush1.xpose.msra.mxu0 0.0
        %811 = vmatprep.subr.mxu0 0.0
        %812 = vmatpush1.xpose.msra.mxu0 0.0
        %813 = vmatprep.subr.mxu0 0.0
        %814 = vmatpush1.xpose.msra.mxu0 0.0
        %815 = vmatprep.subr.mxu0 0.0
        %816 = vmatpush1.xpose.msra.mxu0 0.0
        %817 = vmatprep.subr.mxu0 0.0
        %818 = vmatpush1.xpose.msra.mxu0 0.0
        %819 = vmatprep.subr.mxu0 0.0
        %820 = vmatpush1.xpose.msra.mxu0 0.0
        %821 = vmatprep.subr.mxu0 0.0
        %822 = vmatpush1.xpose.msra.mxu0 0.0
        %823 = vmatprep.subr.mxu0 0.0
        %824 = vmatpush1.xpose.msra.mxu0 0.0
        %825 = vmatprep.subr.mxu0 0.0
        %826 = vmatpush1.xpose.msra.mxu0 0.0
        %827 = vmatprep.subr.mxu0 0.0
        %828 = vmatpush1.xpose.msra.mxu0 0.0
        %829 = vmatprep.subr.mxu0 0.0
        %830 = vmatpush1.xpose.msra.mxu0 0.0
        %831 = vmatprep.subr.mxu0 0.0
        %832 = vmatpush1.xpose.msra.mxu0 0.0
        %833 = vmatprep.subr.mxu0 0.0
        %834 = vmatpush1.xpose.msra.mxu0 0.0
        %835 = vmatprep.subr.mxu0 0.0
        %836 = vmatpush1.xpose.msra.mxu0 0.0
        %837 = vmatprep.subr.mxu0 0.0
        %838 = vmatpush1.xpose.msra.mxu0 0.0
        %839 = vmatprep.subr.mxu0 0.0
        %840 = vmatpush1.xpose.msra.mxu0 0.0
        %841 = vmatprep.mubr.f32.mxu0 0.0
        %842 = vmatmul.mubr.f32.gmra.mrb[0].mxu0 %v766
        %v843 = vpop.f32.mrb[0].mxu0
        %v844 = vadd.f32 0.0, %v843
        %v845 = vpop.f32.mrb[0].mxu0
        %846 = vmatprep.mubr.f32.mxu0 0.0
        %847 = vmatmul.mubr.f32.gmra.mrb[0].mxu0 %v769
        %v848 = vpop.f32.mrb[0].mxu0
        %v849 = vadd.f32 0.0, %v848
        %v850 = vpop.f32.mrb[0].mxu0
        %851 = vdwg.mxu0
        %v853 = vsel %vm590, %v579, 0
        %v856 = vsel %vm590, %v580, 0
        %v859 = vsel %vm590, %v588, 0
        %v862 = vsel %vm590, %v589, 0
        %864 = vmatprep.subr.mxu0 0.0
        %865 = vmatpush1.xpose.msra.mxu0 %v859
        %866 = vmatprep.subr.mxu0 0.0
        %867 = vmatpush1.xpose.msra.mxu0 %v862
        %868 = vmatprep.subr.mxu0 0.0
        %869 = vmatpush1.xpose.msra.mxu0 0.0
        %870 = vmatprep.subr.mxu0 0.0
        %871 = vmatpush1.xpose.msra.mxu0 0.0
        %872 = vmatprep.subr.mxu0 0.0
        %873 = vmatpush1.xpose.msra.mxu0 0.0
        %874 = vmatprep.subr.mxu0 0.0
        %875 = vmatpush1.xpose.msra.mxu0 0.0
        %876 = vmatprep.subr.mxu0 0.0
        %877 = vmatpush1.xpose.msra.mxu0 0.0
        %878 = vmatprep.subr.mxu0 0.0
        %879 = vmatpush1.xpose.msra.mxu0 0.0
        %880 = vmatprep.subr.mxu0 0.0
        %881 = vmatpush1.xpose.msra.mxu0 0.0
        %882 = vmatprep.subr.mxu0 0.0
        %883 = vmatpush1.xpose.msra.mxu0 0.0
        %884 = vmatprep.subr.mxu0 0.0
        %885 = vmatpush1.xpose.msra.mxu0 0.0
        %886 = vmatprep.subr.mxu0 0.0
        %887 = vmatpush1.xpose.msra.mxu0 0.0
        %888 = vmatprep.subr.mxu0 0.0
        %889 = vmatpush1.xpose.msra.mxu0 0.0
        %890 = vmatprep.subr.mxu0 0.0
        %891 = vmatpush1.xpose.msra.mxu0 0.0
        %892 = vmatprep.subr.mxu0 0.0
        %893 = vmatpush1.xpose.msra.mxu0 0.0
        %894 = vmatprep.subr.mxu0 0.0
        %895 = vmatpush1.xpose.msra.mxu0 0.0
        %896 = vmatprep.subr.mxu0 0.0
        %897 = vmatpush1.xpose.msra.mxu0 0.0
        %898 = vmatprep.subr.mxu0 0.0
        %899 = vmatpush1.xpose.msra.mxu0 0.0
        %900 = vmatprep.subr.mxu0 0.0
        %901 = vmatpush1.xpose.msra.mxu0 0.0
        %902 = vmatprep.subr.mxu0 0.0
        %903 = vmatpush1.xpose.msra.mxu0 0.0
        %904 = vmatprep.subr.mxu0 0.0
        %905 = vmatpush1.xpose.msra.mxu0 0.0
        %906 = vmatprep.subr.mxu0 0.0
        %907 = vmatpush1.xpose.msra.mxu0 0.0
        %908 = vmatprep.subr.mxu0 0.0
        %909 = vmatpush1.xpose.msra.mxu0 0.0
        %910 = vmatprep.subr.mxu0 0.0
        %911 = vmatpush1.xpose.msra.mxu0 0.0
        %912 = vmatprep.subr.mxu0 0.0
        %913 = vmatpush1.xpose.msra.mxu0 0.0
        %914 = vmatprep.subr.mxu0 0.0
        %915 = vmatpush1.xpose.msra.mxu0 0.0
        %916 = vmatprep.subr.mxu0 0.0
        %917 = vmatpush1.xpose.msra.mxu0 0.0
        %918 = vmatprep.subr.mxu0 0.0
        %919 = vmatpush1.xpose.msra.mxu0 0.0
        %920 = vmatprep.subr.mxu0 0.0
        %921 = vmatpush1.xpose.msra.mxu0 0.0
        %922 = vmatprep.subr.mxu0 0.0
        %923 = vmatpush1.xpose.msra.mxu0 0.0
        %924 = vmatprep.subr.mxu0 0.0
        %925 = vmatpush1.xpose.msra.mxu0 0.0
        %926 = vmatprep.subr.mxu0 0.0
        %927 = vmatpush1.xpose.msra.mxu0 0.0
        %928 = vmatprep.mubr.f32.mxu0 0.0
        %929 = vmatmul.mubr.f32.gmra.mrb[0].mxu0 %v853
        %v930 = vpop.f32.mrb[0].mxu0
        %v931 = vadd.f32 0.0, %v930
        %v932 = vpop.f32.mrb[0].mxu0
        %933 = vmatprep.mubr.f32.mxu0 0.0
        %934 = vmatmul.mubr.f32.gmra.mrb[0].mxu0 %v856
        %v935 = vpop.f32.mrb[0].mxu0
        %v936 = vadd.f32 0.0, %v935
        %v937 = vpop.f32.mrb[0].mxu0
        %938 = vdwg.mxu0
        %vm939 = vcmp.gt.f32.partialorder %v670, 0.0
        %vm940 = vcmp.gt.f32.partialorder %v675, 0.0
        %vm941 = vcmp.gt.f32.partialorder %v757, 0.0
        %vm942 = vcmp.gt.f32.partialorder %v762, 0.0
        %vm943 = vcmp.gt.f32.partialorder %v844, 0.0
        %vm944 = vcmp.gt.f32.partialorder %v849, 0.0
        %vm945 = vcmp.gt.f32.partialorder %v931, 0.0
        %vm946 = vcmp.gt.f32.partialorder %v936, 0.0
        %v947 = vmul.f32 %v670, 0.2
        %v948 = vmul.f32 %v675, 0.2
        %v949 = vmul.f32 %v757, 0.2
        %v950 = vmul.f32 %v762, 0.2
        %v951 = vmul.f32 %v844, 0.2
        %v952 = vmul.f32 %v849, 0.2
        %v953 = vmul.f32 %v931, 0.2
        %v954 = vmul.f32 %v936, 0.2
        %v955 = vsel %vm939, %v670, %v947
        %v956 = vsel %vm940, %v675, %v948
        %v957 = vsel %vm941, %v757, %v949
        %v958 = vsel %vm942, %v762, %v950
        %v959 = vsel %vm943, %v844, %v951
        %v960 = vsel %vm944, %v849, %v952
        %v961 = vsel %vm945, %v931, %v953
        %v962 = vsel %vm946, %v936, %v954
        %v963 = vld [vmem:[%s4] sm:$0xff]
        %v964 = vld [vmem:[%s4 + $0x8] sm:$0xff]
        %v965 = vadd.f32 %v955, %v963
        %v966 = vadd.f32 %v956, %v964
        %v967 = vadd.f32 %v957, %v963
        %v968 = vadd.f32 %v958, %v964
        %v969 = vadd.f32 %v959, %v963
        %v970 = vadd.f32 %v960, %v964
        %v971 = vadd.f32 %v961, %v963
        %v972 = vadd.f32 %v962, %v964
        %vm973 = vcmask 130048
        %v974 = vsel %vm973, %v965, -inf
        %975 = vmax.xlane.f32.xlu0 %v974
        %v976 = vpop.xlane.xlu0 %975
        %v977 = vsel %vm973, %v966, -inf
        %978 = vmax.xlane.f32.xlu0 %v977
        %v979 = vpop.xlane.xlu0 %978
        %v980 = vsel %vm973, %v967, -inf
        %981 = vmax.xlane.f32.xlu0 %v980
        %v982 = vpop.xlane.xlu0 %981
        %v983 = vsel %vm973, %v968, -inf
        %984 = vmax.xlane.f32.xlu0 %v983
        %v985 = vpop.xlane.xlu0 %984
        %v986 = vsel %vm973, %v969, -inf
        %987 = vmax.xlane.f32.xlu0 %v986
        %v988 = vpop.xlane.xlu0 %987
        %v989 = vsel %vm973, %v970, -inf
        %990 = vmax.xlane.f32.xlu0 %v989
        %v991 = vpop.xlane.xlu0 %990
        %v992 = vsel %vm973, %v971, -inf
        %993 = vmax.xlane.f32.xlu0 %v992
        %v994 = vpop.xlane.xlu0 %993
        %v995 = vsel %vm973, %v972, -inf
        %996 = vmax.xlane.f32.xlu0 %v995
        %v997 = vpop.xlane.xlu0 %996
        %v998 = vsub.f32 %v965, %v976
        %v999 = vsub.f32 %v966, %v979
        %v1000 = vsub.f32 %v967, %v982
        %v1001 = vsub.f32 %v968, %v985
        %v1002 = vsub.f32 %v969, %v988
        %v1003 = vsub.f32 %v970, %v991
        %v1004 = vsub.f32 %v971, %v994
        %v1005 = vsub.f32 %v972, %v997
        %v1006 = vmul.f32 %v998, 1.442695
        %v1007 = vpow.pop %v1006
        %v1008 = vmul.f32 %v999, 1.442695
        %v1009 = vpow.pop %v1008
        %v1010 = vmul.f32 %v1000, 1.442695
        %v1011 = vpow.pop %v1010
        %v1012 = vmul.f32 %v1001, 1.442695
        %v1013 = vpow.pop %v1012
        %v1014 = vmul.f32 %v1002, 1.442695
        %v1015 = vpow.pop %v1014
        %v1016 = vmul.f32 %v1003, 1.442695
        %v1017 = vpow.pop %v1016
        %v1018 = vmul.f32 %v1004, 1.442695
        %v1019 = vpow.pop %v1018
        %v1020 = vmul.f32 %v1005, 1.442695
        %v1021 = vpow.pop %v1020
        %v1022 = vsel %vm973, %v1007, 0.0
        %1023 = vadd.xlane.f32.xlu0 %v1022
        %v1024 = vpop.xlane.xlu0 %1023
        %v1025 = vsel %vm973, %v1009, 0.0
        %1026 = vadd.xlane.f32.xlu0 %v1025
        %v1027 = vpop.xlane.xlu0 %1026
        %v1028 = vsel %vm973, %v1011, 0.0
        %1029 = vadd.xlane.f32.xlu0 %v1028
        %v1030 = vpop.xlane.xlu0 %1029
        %v1031 = vsel %vm973, %v1013, 0.0
        %1032 = vadd.xlane.f32.xlu0 %v1031
        %v1033 = vpop.xlane.xlu0 %1032
        %v1034 = vsel %vm973, %v1015, 0.0
        %1035 = vadd.xlane.f32.xlu0 %v1034
        %v1036 = vpop.xlane.xlu0 %1035
        %v1037 = vsel %vm973, %v1017, 0.0
        %1038 = vadd.xlane.f32.xlu0 %v1037
        %v1039 = vpop.xlane.xlu0 %1038
        %v1040 = vsel %vm973, %v1019, 0.0
        %1041 = vadd.xlane.f32.xlu0 %v1040
        %v1042 = vpop.xlane.xlu0 %1041
        %v1043 = vsel %vm973, %v1021, 0.0
        %1044 = vadd.xlane.f32.xlu0 %v1043
        %v1045 = vpop.xlane.xlu0 %1044
        %v1046 = vpack.c.bf16 %v1009, %v1007
        %v1047 = vpack.c.bf16 %v1013, %v1011
        %v1048 = vpack.c.bf16 %v1017, %v1015
        %v1049 = vpack.c.bf16 %v1021, %v1019
        %v1050 = vpack.c.bf16 %v406, %v401
        %v1051 = vpack.c.bf16 %v416, %v411
        %v1052 = vpack.c.bf16 %v426, %v421
        %v1053 = vpack.c.bf16 %v436, %v431
        %v1055 = vsel %vm973, %v1046, 0
        %1057 = vmatprep.subr.bf16.mxu0 0
        %1058 = vmatpush1.bf16.msra.mxu0 %v1050
        %1059 = vmatprep.subr.bf16.mxu0 0
        %1060 = vmatpush1.bf16.msra.mxu0 0
        %1061 = vmatprep.subr.bf16.mxu0 0
        %1062 = vmatpush1.bf16.msra.mxu0 0
        %1063 = vmatprep.subr.bf16.mxu0 0
        %1064 = vmatpush1.bf16.msra.mxu0 0
        %1065 = vmatprep.subr.bf16.mxu0 0
        %1066 = vmatpush1.bf16.msra.mxu0 0
        %1067 = vmatprep.subr.bf16.mxu0 0
        %1068 = vmatpush1.bf16.msra.mxu0 0
        %1069 = vmatprep.subr.bf16.mxu0 0
        %1070 = vmatpush1.bf16.msra.mxu0 0
        %1071 = vmatprep.subr.bf16.mxu0 0
        %1072 = vmatpush1.bf16.msra.mxu0 0
        %1073 = vmatprep.subr.bf16.mxu0 0
        %1074 = vmatpush1.bf16.msra.mxu0 0
        %1075 = vmatprep.subr.bf16.mxu0 0
        %1076 = vmatpush1.bf16.msra.mxu0 0
        %1077 = vmatprep.subr.bf16.mxu0 0
        %1078 = vmatpush1.bf16.msra.mxu0 0
        %1079 = vmatprep.subr.bf16.mxu0 0
        %1080 = vmatpush1.bf16.msra.mxu0 0
        %1081 = vmatprep.subr.bf16.mxu0 0
        %1082 = vmatpush1.bf16.msra.mxu0 0
        %1083 = vmatprep.subr.bf16.mxu0 0
        %1084 = vmatpush1.bf16.msra.mxu0 0
        %1085 = vmatprep.subr.bf16.mxu0 0
        %1086 = vmatpush1.bf16.msra.mxu0 0
        %1087 = vmatprep.subr.bf16.mxu0 0
        %1088 = vmatpush1.bf16.msra.mxu0 0
        %1089 = vmatprep.mubr.bf16.mxu0 0
        %1090 = vmatmul.mubr.bf16.gmra.mrb[0].mxu0 %v1055
        %v1091 = vpop.f32.mrb[0].mxu0
        %v1092 = vadd.f32 0.0, %v1091
        %v1093 = vpop.f32.mrb[0].mxu0
        %v1094 = vpop.f32.mrb[0].mxu0
        %v1095 = vadd.f32 0.0, %v1094
        %v1096 = vpop.f32.mrb[0].mxu0
        %1097 = vdwg.mxu0
        %v1099 = vsel %vm973, %v1047, 0
        %1101 = vmatprep.subr.bf16.mxu0 0
        %1102 = vmatpush1.bf16.msra.mxu0 %v1051
        %1103 = vmatprep.subr.bf16.mxu0 0
        %1104 = vmatpush1.bf16.msra.mxu0 0
        %1105 = vmatprep.subr.bf16.mxu0 0
        %1106 = vmatpush1.bf16.msra.mxu0 0
        %1107 = vmatprep.subr.bf16.mxu0 0
        %1108 = vmatpush1.bf16.msra.mxu0 0
        %1109 = vmatprep.subr.bf16.mxu0 0
        %1110 = vmatpush1.bf16.msra.mxu0 0
        %1111 = vmatprep.subr.bf16.mxu0 0
        %1112 = vmatpush1.bf16.msra.mxu0 0
        %1113 = vmatprep.subr.bf16.mxu0 0
        %1114 = vmatpush1.bf16.msra.mxu0 0
        %1115 = vmatprep.subr.bf16.mxu0 0
        %1116 = vmatpush1.bf16.msra.mxu0 0
        %1117 = vmatprep.subr.bf16.mxu0 0
        %1118 = vmatpush1.bf16.msra.mxu0 0
        %1119 = vmatprep.subr.bf16.mxu0 0
        %1120 = vmatpush1.bf16.msra.mxu0 0
        %1121 = vmatprep.subr.bf16.mxu0 0
        %1122 = vmatpush1.bf16.msra.mxu0 0
        %1123 = vmatprep.subr.bf16.mxu0 0
        %1124 = vmatpush1.bf16.msra.mxu0 0
        %1125 = vmatprep.subr.bf16.mxu0 0
        %1126 = vmatpush1.bf16.msra.mxu0 0
        %1127 = vmatprep.subr.bf16.mxu0 0
        %1128 = vmatpush1.bf16.msra.mxu0 0
        %1129 = vmatprep.subr.bf16.mxu0 0
        %1130 = vmatpush1.bf16.msra.mxu0 0
        %1131 = vmatprep.subr.bf16.mxu0 0
        %1132 = vmatpush1.bf16.msra.mxu0 0
        %1133 = vmatprep.mubr.bf16.mxu0 0
        %1134 = vmatmul.mubr.bf16.gmra.mrb[0].mxu0 %v1099
        %v1135 = vpop.f32.mrb[0].mxu0
        %v1136 = vadd.f32 0.0, %v1135
        %v1137 = vpop.f32.mrb[0].mxu0
        %v1138 = vpop.f32.mrb[0].mxu0
        %v1139 = vadd.f32 0.0, %v1138
        %v1140 = vpop.f32.mrb[0].mxu0
        %1141 = vdwg.mxu0
        %v1143 = vsel %vm973, %v1048, 0
        %1145 = vmatprep.subr.bf16.mxu0 0
        %1146 = vmatpush1.bf16.msra.mxu0 %v1052
        %1147 = vmatprep.subr.bf16.mxu0 0
        %1148 = vmatpush1.bf16.msra.mxu0 0
        %1149 = vmatprep.subr.bf16.mxu0 0
        %1150 = vmatpush1.bf16.msra.mxu0 0
        %1151 = vmatprep.subr.bf16.mxu0 0
        %1152 = vmatpush1.bf16.msra.mxu0 0
        %1153 = vmatprep.subr.bf16.mxu0 0
        %1154 = vmatpush1.bf16.msra.mxu0 0
        %1155 = vmatprep.subr.bf16.mxu0 0
        %1156 = vmatpush1.bf16.msra.mxu0 0
        %1157 = vmatprep.subr.bf16.mxu0 0
        %1158 = vmatpush1.bf16.msra.mxu0 0
        %1159 = vmatprep.subr.bf16.mxu0 0
        %1160 = vmatpush1.bf16.msra.mxu0 0
        %1161 = vmatprep.subr.bf16.mxu0 0
        %1162 = vmatpush1.bf16.msra.mxu0 0
        %1163 = vmatprep.subr.bf16.mxu0 0
        %1164 = vmatpush1.bf16.msra.mxu0 0
        %1165 = vmatprep.subr.bf16.mxu0 0
        %1166 = vmatpush1.bf16.msra.mxu0 0
        %1167 = vmatprep.subr.bf16.mxu0 0
        %1168 = vmatpush1.bf16.msra.mxu0 0
        %1169 = vmatprep.subr.bf16.mxu0 0
        %1170 = vmatpush1.bf16.msra.mxu0 0
        %1171 = vmatprep.subr.bf16.mxu0 0
        %1172 = vmatpush1.bf16.msra.mxu0 0
        %1173 = vmatprep.subr.bf16.mxu0 0
        %1174 = vmatpush1.bf16.msra.mxu0 0
        %1175 = vmatprep.subr.bf16.mxu0 0
        %1176 = vmatpush1.bf16.msra.mxu0 0
        %1177 = vmatprep.mubr.bf16.mxu0 0
        %1178 = vmatmul.mubr.bf16.gmra.mrb[0].mxu0 %v1143
        %v1179 = vpop.f32.mrb[0].mxu0
        %v1180 = vadd.f32 0.0, %v1179
        %v1181 = vpop.f32.mrb[0].mxu0
        %v1182 = vpop.f32.mrb[0].mxu0
        %v1183 = vadd.f32 0.0, %v1182
        %v1184 = vpop.f32.mrb[0].mxu0
        %1185 = vdwg.mxu0
        %v1187 = vsel %vm973, %v1049, 0
        %1189 = vmatprep.subr.bf16.mxu0 0
        %1190 = vmatpush1.bf16.msra.mxu0 %v1053
        %1191 = vmatprep.subr.bf16.mxu0 0
        %1192 = vmatpush1.bf16.msra.mxu0 0
        %1193 = vmatprep.subr.bf16.mxu0 0
        %1194 = vmatpush1.bf16.msra.mxu0 0
        %1195 = vmatprep.subr.bf16.mxu0 0
        %1196 = vmatpush1.bf16.msra.mxu0 0
        %1197 = vmatprep.subr.bf16.mxu0 0
        %1198 = vmatpush1.bf16.msra.mxu0 0
        %1199 = vmatprep.subr.bf16.mxu0 0
        %1200 = vmatpush1.bf16.msra.mxu0 0
        %1201 = vmatprep.subr.bf16.mxu0 0
        %1202 = vmatpush1.bf16.msra.mxu0 0
        %1203 = vmatprep.subr.bf16.mxu0 0
        %1204 = vmatpush1.bf16.msra.mxu0 0
        %1205 = vmatprep.subr.bf16.mxu0 0
        %1206 = vmatpush1.bf16.msra.mxu0 0
        %1207 = vmatprep.subr.bf16.mxu0 0
        %1208 = vmatpush1.bf16.msra.mxu0 0
        %1209 = vmatprep.subr.bf16.mxu0 0
        %1210 = vmatpush1.bf16.msra.mxu0 0
        %1211 = vmatprep.subr.bf16.mxu0 0
        %1212 = vmatpush1.bf16.msra.mxu0 0
        %1213 = vmatprep.subr.bf16.mxu0 0
        %1214 = vmatpush1.bf16.msra.mxu0 0
        %1215 = vmatprep.subr.bf16.mxu0 0
        %1216 = vmatpush1.bf16.msra.mxu0 0
        %1217 = vmatprep.subr.bf16.mxu0 0
        %1218 = vmatpush1.bf16.msra.mxu0 0
        %1219 = vmatprep.subr.bf16.mxu0 0
        %1220 = vmatpush1.bf16.msra.mxu0 0
        %1221 = vmatprep.mubr.bf16.mxu0 0
        %1222 = vmatmul.mubr.bf16.gmra.mrb[0].mxu0 %v1187
        %v1223 = vpop.f32.mrb[0].mxu0
        %v1224 = vadd.f32 0.0, %v1223
        %v1225 = vpop.f32.mrb[0].mxu0
        %v1226 = vpop.f32.mrb[0].mxu0
        %v1227 = vadd.f32 0.0, %v1226
        %v1228 = vpop.f32.mrb[0].mxu0
        %1229 = vdwg.mxu0
        %v1230 = vrcp.pop %v1024
        %v1231 = vrcp.pop %v1027
        %v1232 = vrcp.pop %v1030
        %v1233 = vrcp.pop %v1033
        %v1234 = vrcp.pop %v1036
        %v1235 = vrcp.pop %v1039
        %v1236 = vrcp.pop %v1042
        %v1237 = vrcp.pop %v1045
        %v1238 = vmul.f32 %v1092, %v1230
        %v1239 = vmul.f32 %v1095, %v1231
        %v1240 = vmul.f32 %v1136, %v1232
        %v1241 = vmul.f32 %v1139, %v1233
        %v1242 = vmul.f32 %v1180, %v1234
        %v1243 = vmul.f32 %v1183, %v1235
        %v1244 = vmul.f32 %v1224, %v1236
        %v1245 = vmul.f32 %v1227, %v1237
        %1246 = vst [vmem:[%s278] sm:$0xff] %v1238
        %1247 = vst [vmem:[%s278 + $0x8] sm:$0xff] %v1239
        %1248 = vst [vmem:[%s278 + $0x10] sm:$0xff] %v1240
        %1249 = vst [vmem:[%s278 + $0x18] sm:$0xff] %v1241
        %1250 = vst [vmem:[%s278 + $0x20] sm:$0xff] %v1242
        %1251 = vst [vmem:[%s278 + $0x28] sm:$0xff] %v1243
        %1252 = vst [vmem:[%s278 + $0x30] sm:$0xff] %v1244
        %1253 = vst [vmem:[%s278 + $0x38] sm:$0xff] %v1245
        %v1254 = vadd.f32 %v1238, %v1239
        %v1255 = vadd.f32 %v1254, %v1240
        %v1256 = vadd.f32 %v1255, %v1241
        %v1257 = vadd.f32 %v1256, %v1242
        %v1258 = vadd.f32 %v1257, %v1243
        %v1259 = vadd.f32 %v1258, %v1244
        %v1260 = vadd.f32 %v1259, %v1245
        %v1261 = vrot.slane %v1260, 4
        %v1262 = vadd.f32 %v1260, %v1261
        %v1263 = vrot.slane %v1262, 2
        %v1264 = vadd.f32 %v1262, %v1263
        %v1265 = vrot.slane %v1264, 1
        %v1266 = vadd.f32 %v1264, %v1265
        %1267 = vst [vmem:[%s284] sm:$0x1] %v1266
        %v1268 = vmul.f32 %v1238, %v1238
        %v1269 = vmul.f32 %v1239, %v1239
        %v1270 = vmul.f32 %v1240, %v1240
        %v1271 = vmul.f32 %v1241, %v1241
        %v1272 = vmul.f32 %v1242, %v1242
        %v1273 = vmul.f32 %v1243, %v1243
        %v1274 = vmul.f32 %v1244, %v1244
        %v1275 = vmul.f32 %v1245, %v1245
        %v1276 = vadd.f32 %v1268, %v1269
        %v1277 = vadd.f32 %v1276, %v1270
        %v1278 = vadd.f32 %v1277, %v1271
        %v1279 = vadd.f32 %v1278, %v1272
        %v1280 = vadd.f32 %v1279, %v1273
        %v1281 = vadd.f32 %v1280, %v1274
        %v1282 = vadd.f32 %v1281, %v1275
        %v1283 = vrot.slane %v1282, 4
        %v1284 = vadd.f32 %v1282, %v1283
        %v1285 = vrot.slane %v1284, 2
        %v1286 = vadd.f32 %v1284, %v1285
        %v1287 = vrot.slane %v1286, 1
        %v1288 = vadd.f32 %v1286, %v1287
        %1289 = vst [vmem:[%s290] sm:$0x1] %v1288
        %s1290 = sand.u32 %s143, 1
        %s1291 = scalar_lea.sflag [#allocation3], %s1290
        %s1292 = sand.u32 %s143, 1
        %s1293 = smul.addr %s1292, 64
        %s1294 = scalar_lea.vmem [#allocation2], %s1293
        %s1295 = sand.u32 %s25, 1
        %s1296 = scalar_lea.sflag [#allocation5], %s1295
        %s1297 = sand.u32 %s169, 1
        %s1298 = scalar_lea.vmem [#allocation4], %s1297
        %s1299 = sand.u32 %s25, 1
        %s1300 = scalar_lea.sflag [#allocation5], %s1299
        %s1301 = sand.u32 %s195, 1
        %s1302 = scalar_lea.vmem [#allocation6], %s1301
        // Predicated region
        $region41: #{tpu_custom_call.1} parent=39 // pred_check
          %p1303 = pneg %p153
        $region42: #{tpu_custom_call.1} parent=39 // pred_check_branch
          %1305 = sbr.rel (%p1303) target = $region44
        $region43: #{tpu_custom_call.1} parent=39 // pred_region
          %s1306 = smul.u32 4, %s25
          %s1308 = ssub.s32 1024, 1024
          %1309 = vsyncadd %s1291, %s1308
          %s1310 = smul.addr %s1306, 2
          %s1311 = smul.addr %s1310, 128
          %s1312 = scalar_lea.hbm %s5, %s1311
          %s1313 = sshll.u32 %s1294, 4
          %s1314 = int_to_ptr.vmem [resolvable:$true] %s1313
          %1319 = dma.vmem_to_hbm [thread:$0]  %s1314, 1024, %s1312, %s1291, 128, 128, 8
        $region44: #{tpu_custom_call.1} parent=39 // pred_fallthru
          _
        // Predicated region
        $region45: #{tpu_custom_call.1} parent=39 // pred_check
          %p1320 = pneg %p179
        $region46: #{tpu_custom_call.1} parent=39 // pred_check_branch
          %1322 = sbr.rel (%p1320) target = $region48
        $region47: #{tpu_custom_call.1} parent=39 // pred_region
          %s1324 = ssub.s32 16, 16
          %1325 = vsyncadd %s1296, %s1324
          %s1326 = smul.addr %s25, 16
          %s1327 = scalar_lea.hbm %s6, %s1326
          %s1329 = sshll.u32 %s1298, 4
          %s1330 = int_to_ptr.vmem [resolvable:$true] %s1329
          %1332 = dma.vmem_to_hbm [thread:$0]  %s1330, 16, %s1327, %s1296
        $region48: #{tpu_custom_call.1} parent=39 // pred_fallthru
          _
        // Predicated region
        $region49: #{tpu_custom_call.1} parent=39 // pred_check
          %p1333 = pneg %p205
        $region50: #{tpu_custom_call.1} parent=39 // pred_check_branch
          %1335 = sbr.rel (%p1333) target = $region52
        $region51: #{tpu_custom_call.1} parent=39 // pred_region
          %s1337 = ssub.s32 16, 16
          %1338 = vsyncadd %s1300, %s1337
          %s1339 = smul.addr %s25, 16
          %s1340 = scalar_lea.hbm %s7, %s1339
          %s1342 = sshll.u32 %s1302, 4
          %s1343 = int_to_ptr.vmem [resolvable:$true] %s1342
          %1345 = dma.vmem_to_hbm [thread:$0]  %s1343, 16, %s1340, %s1300
        $region52: #{tpu_custom_call.1} parent=39 // pred_fallthru
          _
      $region40: #{tpu_custom_call.1} parent=5 // pred_fallthru
        _
      %p1346 = scmp.le.s32.totalorder 2, %s20
      // Predicated region
      $region53: #{tpu_custom_call.1} parent=5 // pred_check
        %p1347 = pneg %p1346
      $region54: #{tpu_custom_call.1} parent=5 // pred_check_branch
        %1349 = sbr.rel (%p1347) target = $region56
      $region55: #{tpu_custom_call.1} parent=5 // pred_region
        %s1350 = ssub.s32 %s20, 2
        // Predicated region
        $region57: #{tpu_custom_call.1} parent=55 // pred_check
          %p1351 = pneg %p159
        $region58: #{tpu_custom_call.1} parent=55 // pred_check_branch
          %1353 = sbr.rel (%p1351) target = $region60
        $region59: #{tpu_custom_call.1} parent=55 // pred_region
          %s1354 = sand.u32 %s144, 1
          %s1355 = scalar_lea.sflag [#allocation3], %s1354
          %s1356 = sand.u32 %s144, 1
          %s1357 = smul.addr %s1356, 64
          %s1358 = scalar_lea.vmem [#allocation2], %s1357
          %1359 = dma.done %s1355, 1024
        $region60: #{tpu_custom_call.1} parent=55 // pred_fallthru
          _
        // Predicated region
        $region61: #{tpu_custom_call.1} parent=55 // pred_check
          %p1360 = pneg %p185
        $region62: #{tpu_custom_call.1} parent=55 // pred_check_branch
          %1362 = sbr.rel (%p1360) target = $region64
        $region63: #{tpu_custom_call.1} parent=55 // pred_region
          %s1363 = sand.u32 %s26, 1
          %s1364 = scalar_lea.sflag [#allocation5], %s1363
          %s1365 = sand.u32 %s170, 1
          %s1366 = scalar_lea.vmem [#allocation4], %s1365
          %1367 = dma.done %s1364, 16
        $region64: #{tpu_custom_call.1} parent=55 // pred_fallthru
          _
        // Predicated region
        $region65: #{tpu_custom_call.1} parent=55 // pred_check
          %p1368 = pneg %p211
        $region66: #{tpu_custom_call.1} parent=55 // pred_check_branch
          %1370 = sbr.rel (%p1368) target = $region68
        $region67: #{tpu_custom_call.1} parent=55 // pred_region
          %s1371 = sand.u32 %s26, 1
          %s1372 = scalar_lea.sflag [#allocation5], %s1371
          %s1373 = sand.u32 %s196, 1
          %s1374 = scalar_lea.vmem [#allocation6], %s1373
          %1375 = dma.done %s1372, 16
        $region68: #{tpu_custom_call.1} parent=55 // pred_fallthru
          _
      $region56: #{tpu_custom_call.1} parent=5 // pred_fallthru
        _
    $region6: #{tpu_custom_call.1} parent=1 // loop_footer
      %s24 = sadd.s32 1, %s20
    $region7: #{tpu_custom_call.1} parent=1 // loop_footer_branch
      %19 = sbr.rel target = $region3
    $region8: #{tpu_custom_call.1} parent=1 // loop_exit
      _
    %1376 = vsyncpa [#allocation3], 1
    %s1377 = scalar_lea.sflag [#allocation3], 1
    %1378 = vsyncpa %s1377, 1
    %1379 = vsyncpa [#allocation5], 1
    %s1380 = scalar_lea.sflag [#allocation5], 1
    %1381 = vsyncpa %s1380, 1

</llo_original>
